<compile_context>
chip_gen: v7x
topology: tpu7x:2x2x1
jax: 0.10.0
libtpu: 0.0.40
codegen_flags: <defaults>
</compile_context>

<pallas_src>
import functools

import jax
import jax.numpy as jnp
from jax import lax
from jax.experimental import pallas as pl
from jax.experimental.pallas import tpu as pltpu


# ---------------------------------------------------------------------------
# Kernels
# ---------------------------------------------------------------------------
def _spatial_conv_kernel(x_ref, w_ref, y_ref, stats_ref, *, ho):
    """Spatial (1,k,k) conv over a block of TB frame-slabs + BN partial stats.

    x_ref:     (TB, Hp, Wp*Ci)    bf16  H/W pre-padded activations (lane = Wp*Ci)
    w_ref:     (KH, Wp*Ci, Wo*Co) bf16  KW/Ci mixing folded into each KH tap
    y_ref:     (TB*Ho, Wo*Co)     bf16  pre-BN conv output (lane dense)
    stats_ref: (1, 2, Wo*Co)      f32   row0 = sum, row1 = sum of squares
    """
    n_taps, kdim, ncols = w_ref.shape
    tb = x_ref.shape[0]
    x = x_ref[...]                                      # (TB, Hp, kdim)

    acc = jnp.zeros((tb * ho, ncols), jnp.float32)
    for t in range(n_taps):                             # static, fully unrolled
        # Fold all TB slabs into M so every MXU dot runs with M = TB*Ho.
        sl = x[:, t:t + ho, :].reshape(tb * ho, kdim)
        acc = acc + jnp.dot(sl, w_ref[t], preferred_element_type=jnp.float32)

    y_ref[...] = acc.astype(y_ref.dtype)                # bf16 writeback
    s = jnp.sum(acc, axis=0, keepdims=True)             # BN batch-stat partials
    sq = jnp.sum(acc * acc, axis=0, keepdims=True)
    stats_ref[0] = jnp.concatenate([s, sq], axis=0)


def _temporal_conv_kernel(x_ref, w_ref, scale_ref, shift_ref, mask_ref,
                          y_ref, stats_ref, *, ho):
    """Temporal (k,1,1) conv with the stage-1 BN+ReLU fused into its prologue.

    x_ref:     (1, Dp*Ho, ncols)  bf16  pre-BN stage-1 output, D-padded w/ zeros
    w_ref:     (KD, ncols, ncols) bf16  block-diagonal channel-mixing weight
    scale_ref: (1, ncols)         f32   stage-1 BN scale (per lane)
    shift_ref: (1, ncols)         f32   stage-1 BN shift (per lane)
    mask_ref:  (Dp*Ho, 1)         f32   1 for real frames, 0 for D-halo rows
    y_ref:     (TDo*Ho, ncols)    bf16  pre-BN conv_t output
    stats_ref: (1, 2, ncols)      f32   row0 = sum, row1 = sum of squares
    """
    n_taps, _, ncols = w_ref.shape
    out_rows = y_ref.shape[0]
    rows_in = out_rows + (n_taps - 1) * ho

    base = pl.program_id(1) * out_rows                  # first input row needed
    if out_rows % 8 == 0:
        base = pl.multiple_of(base, 8)

    x = x_ref[0, pl.ds(base, rows_in), :].astype(jnp.float32)
    m = mask_ref[pl.ds(base, rows_in), :]
    # Stage-1 BN + ReLU; D-halo rows are forced back to zero by the mask so the
    # temporal zero-padding semantics are preserved.
    a = (jnp.maximum(x * scale_ref[...] + shift_ref[...], 0.0) * m
         ).astype(jnp.bfloat16)

    acc = jnp.zeros((out_rows, ncols), jnp.float32)
    for t in range(n_taps):                             # static, fully unrolled
        acc = acc + jnp.dot(a[t * ho:t * ho + out_rows, :], w_ref[t],
                            preferred_element_type=jnp.float32)

    y_ref[...] = acc.astype(y_ref.dtype)
    s = jnp.sum(acc, axis=0, keepdims=True)
    sq = jnp.sum(acc * acc, axis=0, keepdims=True)
    stats_ref[0] = jnp.concatenate([s, sq], axis=0)


def _bn_relu_kernel(y_ref, scale_ref, shift_ref, o_ref):
    """Lane-dense y*scale + shift, ReLU (final BN_t apply)."""
    y = y_ref[...].astype(jnp.float32)
    o_ref[...] = jnp.maximum(y * scale_ref[...] + shift_ref[...],
                             0.0).astype(o_ref.dtype)


# ---------------------------------------------------------------------------
# pallas_call wrappers
# ---------------------------------------------------------------------------
def _pick_block(total, rows_each, *, target_rows=256, min_steps=2):
    """Largest divisor t of `total` with t*rows_each <= target_rows, preferring
    configurations that leave >= min_steps grid steps for pipelining."""
    divisors = [t for t in range(1, total + 1) if total % t == 0]
    fit = [t for t in divisors if t * rows_each <= target_rows]
    if not fit:
        return 1
    pref = [t for t in fit if (total // t) >= min_steps]
    return max(pref) if pref else max(fit)


def _spatial_pass(xs, ws_big, *, ho, tb):
    """xs: (B, Hp, Wp*Ci) bf16, ws_big: (KH, Wp*Ci, Wo*Co) bf16."""
    b, hp, kdim = xs.shape
    n_taps, _, ncols = ws_big.shape
    g = b // tb
    out_rows = tb * ho

    blk_bytes = (2 * tb * hp * kdim * 2          # x, double buffered
                 + n_taps * kdim * ncols * 2     # weights (resident)
                 + 2 * out_rows * ncols * 2      # y, double buffered
                 + out_rows * ncols * 4)         # f32 accumulator
    vmem_limit = int(min(40 << 20, max(8 << 20, 4 * blk_bytes)))
    flops = 2 * b * ho * kdim * ncols * n_taps
    bytes_accessed = (xs.size * 2 + ws_big.size * 2
                      + b * ho * ncols * 2 + g * 2 * ncols * 4)

    return pl.pallas_call(
        functools.partial(_spatial_conv_kernel, ho=ho),
        grid=(g,),
        in_specs=[
            pl.BlockSpec((tb, hp, kdim), lambda i: (i, 0, 0)),
            pl.BlockSpec((n_taps, kdim, ncols), lambda i: (0, 0, 0)),
        ],
        out_specs=[
            pl.BlockSpec((out_rows, ncols), lambda i: (i, 0)),
            pl.BlockSpec((1, 2, ncols), lambda i: (i, 0, 0)),
        ],
        out_shape=[
            jax.ShapeDtypeStruct((b * ho, ncols), jnp.bfloat16),
            jax.ShapeDtypeStruct((g, 2, ncols), jnp.float32),
        ],
        compiler_params=pltpu.CompilerParams(
            dimension_semantics=("parallel",),
            vmem_limit_bytes=vmem_limit),
        cost_estimate=pl.CostEstimate(flops=flops, transcendentals=0,
                                      bytes_accessed=bytes_accessed),
    )(xs, ws_big)


def _temporal_pass(a_pre, wt_big, scale1, shift1, mask, *, n, dp, do, ho, tdo):
    """a_pre: (N, Dp*Ho, ncols) bf16 pre-BN, D-padded; wt_big: (KD, ncols, ncols)."""
    n_taps, _, ncols = wt_big.shape
    dblk = do // tdo
    out_rows = tdo * ho
    rows_slab = dp * ho
    rows_in = out_rows + (n_taps - 1) * ho

    blk_bytes = (2 * rows_slab * ncols * 2       # pre-BN slab, double buffered
                 + n_taps * ncols * ncols * 2    # weights (resident)
                 + 2 * out_rows * ncols * 2      # y, double buffered
                 + 2 * rows_in * ncols * 4)      # f32 prologue + accumulator
    vmem_limit = int(min(40 << 20, max(8 << 20, 4 * blk_bytes)))
    flops = 2 * n * do * ho * ncols * ncols * n_taps
    bytes_accessed = (a_pre.size * 2 + wt_big.size * 2 + mask.size * 4
                      + n * do * ho * ncols * 2 + n * dblk * 2 * ncols * 4)

    return pl.pallas_call(
        functools.partial(_temporal_conv_kernel, ho=ho),
        grid=(n, dblk),
        in_specs=[
            pl.BlockSpec((1, rows_slab, ncols), lambda i, d: (i, 0, 0)),
            pl.BlockSpec((n_taps, ncols, ncols), lambda i, d: (0, 0, 0)),
            pl.BlockSpec((1, ncols), lambda i, d: (0, 0)),
            pl.BlockSpec((1, ncols), lambda i, d: (0, 0)),
            pl.BlockSpec((rows_slab, 1), lambda i, d: (0, 0)),
        ],
        out_specs=[
            pl.BlockSpec((out_rows, ncols), lambda i, d: (i * dblk + d, 0)),
            pl.BlockSpec((1, 2, ncols), lambda i, d: (i * dblk + d, 0, 0)),
        ],
        out_shape=[
            jax.ShapeDtypeStruct((n * do * ho, ncols), jnp.bfloat16),
            jax.ShapeDtypeStruct((n * dblk, 2, ncols), jnp.float32),
        ],
        compiler_params=pltpu.CompilerParams(
            dimension_semantics=("parallel", "parallel"),
            vmem_limit_bytes=vmem_limit),
        cost_estimate=pl.CostEstimate(flops=flops, transcendentals=0,
                                      bytes_accessed=bytes_accessed),
    )(a_pre, wt_big, scale1, shift1, mask)


def _bn_relu_pass(y, scale_lane, shift_lane, out_dtype):
    """Tiled, lane-dense BN-apply + ReLU over y: (rows, ncols) bf16."""
    rows, ncols = y.shape
    tile = rows
    for cand in (2048, 1024, 512, 256, 128):
        if rows % cand == 0:
            tile = cand
            break
    return pl.pallas_call(
        _bn_relu_kernel,
        grid=(rows // tile,),
        in_specs=[
            pl.BlockSpec((tile, ncols), lambda i: (i, 0)),
            pl.BlockSpec((1, ncols), lambda i: (0, 0)),
            pl.BlockSpec((1, ncols), lambda i: (0, 0)),
        ],
        out_specs=pl.BlockSpec((tile, ncols), lambda i: (i, 0)),
        out_shape=jax.ShapeDtypeStruct((rows, ncols), out_dtype),
        compiler_params=pltpu.CompilerParams(
            dimension_semantics=("parallel",)),
    )(y, scale_lane, shift_lane)


# ---------------------------------------------------------------------------
# Block-weight construction and BN glue (wrapper-side XLA, not hot path)
# ---------------------------------------------------------------------------
def _spatial_block_weight(w_s, *, Wp, Wo):
    """(Co, Ci, 1, KH, KW) -> (KH, Wp*Ci, Wo*Co): fold kw/ci mixing per kh tap."""
    Co, Ci, _, KH, KW = w_s.shape
    wt = jnp.transpose(w_s[:, :, 0, :, :], (2, 3, 1, 0))          # (KH, KW, Ci, Co)
    wi = jnp.arange(Wp)[:, None, None]
    wo = jnp.arange(Wo)[None, :, None]
    kw = jnp.arange(KW)[None, None, :]
    sel = (wi == wo + kw).astype(wt.dtype)                        # stride 1 in W
    big = jnp.einsum('wok,hkic->hwioc', sel, wt)                  # (KH,Wp,Ci,Wo,Co)
    return big.reshape(KH, Wp * Ci, Wo * Co)


def _temporal_block_weight(w_t, *, Wo):
    """(Co, Cm, KD, 1, 1) -> (KD, Wo*Cm, Wo*Co): block-diagonal channel mixing."""
    Co, Cm, KD, _, _ = w_t.shape
    wt = jnp.transpose(w_t[:, :, :, 0, 0], (2, 1, 0))             # (KD, Cm, Co)
    eye = jnp.eye(Wo, dtype=wt.dtype)
    big = jnp.einsum('wv,dic->dwivc', eye, wt)                    # (KD,Wo,Cm,Wo,Co)
    return big.reshape(KD, Wo * Cm, Wo * Co)


def _bn_scale_shift(stats, gamma, beta, *, Wo, Co, count, eps):
    """Reduce per-tile [sum; sum_sq] partials to per-lane BN scale/shift rows."""
    lane_sum = jnp.sum(stats[:, 0, :], axis=0)                    # (Wo*Co,)
    lane_sq = jnp.sum(stats[:, 1, :], axis=0)
    ch_sum = jnp.sum(lane_sum.reshape(Wo, Co), axis=0)            # (Co,)
    ch_sq = jnp.sum(lane_sq.reshape(Wo, Co), axis=0)
    mean = ch_sum / count
    var = jnp.maximum(ch_sq / count - mean * mean, 0.0)           # biased variance
    scale = gamma * lax.rsqrt(var + eps)
    shift = beta - mean * scale
    scale_lane = jnp.tile(scale, Wo).reshape(1, Wo * Co).astype(jnp.float32)
    shift_lane = jnp.tile(shift, Wo).reshape(1, Wo * Co).astype(jnp.float32)
    return scale_lane, shift_lane


# ---------------------------------------------------------------------------
# SepConv3d forward
# ---------------------------------------------------------------------------
def sep_conv3d(x, w_s, gamma_s, beta_s, w_t, gamma_t, beta_t, *,
               kernel_size, stride=1, padding=0, eps=1e-3):
    """Forward of SepConv3d with training-mode BatchNorm (batch statistics)."""
    if stride != 1:
        # TODO(synk): stride > 1 needs strided row/lane gathers in the kernels.
        raise NotImplementedError("sep_conv3d Pallas path supports stride=1 only")

    N, Ci, D, H, W = x.shape
    Co = w_s.shape[0]
    k, p = kernel_size, padding
    Hp, Wp = H + 2 * p, W + 2 * p
    Ho, Wo = Hp - k + 1, Wp - k + 1
    Dp = D + 2 * p
    Do = Dp - k + 1
    ncols = Wo * Co                       # lane dim of working layout (=128 here)
    B = N * D

    # ---- stage 1: spatial conv (1,k,k), stats fused in epilogue -------------
    # layout glue: NCDHW -> (N*D, Hp, Wp*Ci), bf16 operands for the MXU
    xs = jnp.transpose(x, (0, 2, 3, 4, 1)).reshape(B, H, W, Ci)
    xs = jnp.pad(xs, ((0, 0), (p, p), (p, p), (0, 0)))
    xs = xs.reshape(B, Hp, Wp * Ci).astype(jnp.bfloat16)
    ws_big = _spatial_block_weight(w_s, Wp=Wp, Wo=Wo).astype(jnp.bfloat16)

    tb = _pick_block(B, Ho, target_rows=256, min_steps=2)
    y1, st1 = _spatial_pass(xs, ws_big, ho=Ho, tb=tb)             # (B*Ho, ncols) bf16
    scale1, shift1 = _bn_scale_shift(st1, gamma_s, beta_s, Wo=Wo, Co=Co,
                                     count=B * Ho * Wo, eps=eps)

    # ---- stage 2: temporal conv (k,1,1) with fused BN_s+ReLU prologue -------
    # D-pad the PRE-BN activations with zeros; halo rows stay zero post-ReLU
    # because the kernel multiplies by the frame mask after the BN+ReLU.
    a_pre = y1.reshape(N, D, Ho, ncols)
    a_pre = jnp.pad(a_pre, ((0, 0), (p, p), (0, 0), (0, 0)))
    a_pre = a_pre.reshape(N, Dp * Ho, ncols)
    dmask = ((jnp.arange(Dp) >= p) & (jnp.arange(Dp) < p + D)).astype(jnp.float32)
    mask = jnp.repeat(dmask, Ho).reshape(Dp * Ho, 1)
    wt_big = _temporal_block_weight(w_t, Wo=Wo).astype(jnp.bfloat16)

    tdo = _pick_block(Do, Ho, target_rows=256,
                      min_steps=max(1, -(-4 // max(N, 1))))       # >=4 total steps
    y2, st2 = _temporal_pass(a_pre, wt_big, scale1, shift1, mask,
                             n=N, dp=Dp, do=Do, ho=Ho, tdo=tdo)   # (N*Do*Ho, ncols)
    scale2, shift2 = _bn_scale_shift(st2, gamma_t, beta_t, Wo=Wo, Co=Co,
                                     count=N * Do * Ho * Wo, eps=eps)
    out = _bn_relu_pass(y2, scale2, shift2, jnp.float32)          # (N*Do*Ho, ncols)

    # layout glue back to NCDHW
    out = out.reshape(N, Do, Ho, Wo, Co)
    return jnp.transpose(out, (0, 4, 1, 2, 3))


# ---------------------------------------------------------------------------
# Plain-JAX reference (matches PyTorch SepConv3d.forward in training mode)
# ---------------------------------------------------------------------------
def _reference(x, w_s, g_s, b_s, w_t, g_t, b_t, *, stride, padding, eps=1e-3):
    def bn_relu(y, g, b):
        mean = jnp.mean(y, axis=(0, 2, 3, 4), keepdims=True)
        var = jnp.mean(jnp.square(y - mean), axis=(0, 2, 3, 4), keepdims=True)
        y = (y - mean) * lax.rsqrt(var + eps) * g.reshape(1, -1, 1, 1, 1) \
            + b.reshape(1, -1, 1, 1, 1)
        return jnp.maximum(y, 0.0)

    y = lax.conv_general_dilated(
        x, w_s, window_strides=(1, stride, stride),
        padding=[(0, 0), (padding, padding), (padding, padding)],
        dimension_numbers=('NCDHW', 'OIDHW', 'NCDHW'))
    y = bn_relu(y, g_s, b_s)
    y = lax.conv_general_dilated(
        y, w_t, window_strides=(stride, 1, 1),
        padding=[(padding, padding), (0, 0), (0, 0)],
        dimension_numbers=('NCDHW', 'OIDHW', 'NCDHW'))
    return bn_relu(y, g_t, b_t)


if __name__ == "__main__":
    key = jax.random.PRNGKey(0)
    k_x, k_ws, k_wt, k_gs, k_bs, k_gt, k_bt = jax.random.split(key, 7)

    N, Cin, D, H, W = 2, 4, 8, 16, 16
    Cout, K = 8, 3
    stride, padding, eps = 1, 1, 1e-3

    x = jax.random.normal(k_x, (N, Cin, D, H, W), dtype=jnp.float32)
    w_s = 0.1 * jax.random.normal(k_ws, (Cout, Cin, 1, K, K), dtype=jnp.float32)
    w_t = 0.1 * jax.random.normal(k_wt, (Cout, Cout, K, 1, 1), dtype=jnp.float32)
    # PyTorch BN init is gamma=1, beta=0; perturb so the affine path is exercised.
    gamma_s = 1.0 + 0.1 * jax.random.normal(k_gs, (Cout,), dtype=jnp.float32)
    beta_s = 0.1 * jax.random.normal(k_bs, (Cout,), dtype=jnp.float32)
    gamma_t = 1.0 + 0.1 * jax.random.normal(k_gt, (Cout,), dtype=jnp.float32)
    beta_t = 0.1 * jax.random.normal(k_bt, (Cout,), dtype=jnp.float32)

    fwd = jax.jit(functools.partial(sep_conv3d, kernel_size=K, stride=stride,
                                    padding=padding, eps=eps))
    out = jax.block_until_ready(
        fwd(x, w_s, gamma_s, beta_s, w_t, gamma_t, beta_t))

    ref = jax.block_until_ready(
        _reference(x, w_s, gamma_s, beta_s, w_t, gamma_t, beta_t,
                   stride=stride, padding=padding, eps=eps))

    assert out.shape == ref.shape == (N, Cout, D, H, W), (out.shape, ref.shape)
    # bf16 MXU operands + bf16 pre-BN intermediates (f32 accumulation & stats)
    # through two conv+BN stages -> a few 1e-2 absolute error is expected;
    # indexing bugs would give O(1) errors.
    max_err = float(jnp.max(jnp.abs(out - ref)))
    assert jnp.allclose(out, ref, atol=5e-2, rtol=5e-2), max_err

    print("KERNEL_OK")
</pallas_src>

<mosaic_0001>
module attributes {stable_mosaic.version = 11 : i64} {
  func.func @_spatial_conv_kernel(%arg0: i32, %arg1: memref<8x18x72xbf16, #tpu.memory_space<vmem>>, %arg2: memref<3x72x128xbf16, #tpu.memory_space<vmem>>, %arg3: memref<128x128xbf16, #tpu.memory_space<vmem>>, %arg4: memref<1x2x128xf32, #tpu.memory_space<vmem>>) attributes {dimension_semantics = [#tpu.dimension_semantics<parallel>], iteration_bounds = array<i64: 2>, scalar_prefetch = 0 : i64, scratch_operands = 0 : i64, tpu.core_type = #tpu.core_type<tc>, window_params = [{transform_indices = @transform_0, window_bounds = array<i64: 8, 18, 72>}, {pipeline_mode = #tpu.pipeline_mode<synchronous>, transform_indices = @transform_1, window_bounds = array<i64: 3, 72, 128>}, {transform_indices = @transform_2, window_bounds = array<i64: 128, 128>}, {transform_indices = @transform_3, window_bounds = array<i64: 1, 2, 128>}]} {
    %c0 = arith.constant 0 : index
    %c0_0 = arith.constant 0 : index
    %c0_1 = arith.constant 0 : index
    %0 = vector.load %arg1[%c0, %c0_0, %c0_1] : memref<8x18x72xbf16, #tpu.memory_space<vmem>>, vector<8x18x72xbf16>
    %cst = arith.constant 0.000000e+00 : f32
    %1 = vector.broadcast %cst : f32 to vector<128x128xf32>
    %2 = vector.extract_strided_slice %0 {offsets = [0, 0, 0], sizes = [8, 16, 72], strides = [1, 1, 1]} : vector<8x18x72xbf16> to vector<8x16x72xbf16>
    %3 = vector.shape_cast %2 : vector<8x16x72xbf16> to vector<128x72xbf16>
    %c0_2 = arith.constant 0 : index
    %c0_3 = arith.constant 0 : index
    %c0_4 = arith.constant 0 : index
    %4 = vector.load %arg2[%c0_2, %c0_3, %c0_4] : memref<3x72x128xbf16, #tpu.memory_space<vmem>>, vector<1x72x128xbf16>
    %5 = vector.shape_cast %4 : vector<1x72x128xbf16> to vector<72x128xbf16>
    %cst_5 = arith.constant dense<0.000000e+00> : vector<128x128xf32>
    %6 = tpu.matmul %3, %5, %cst_5 {dimension_numbers = #tpu.dot_dimension_numbers<[1], [0], [0], [1], [0, 0, 1, 1], [], []>} : vector<128x72xbf16>, vector<72x128xbf16>, vector<128x128xf32> -> vector<128x128xf32>
    %7 = arith.addf %1, %6 : vector<128x128xf32>
    %8 = vector.extract_strided_slice %0 {offsets = [0, 1, 0], sizes = [8, 16, 72], strides = [1, 1, 1]} : vector<8x18x72xbf16> to vector<8x16x72xbf16>
    %9 = vector.shape_cast %8 : vector<8x16x72xbf16> to vector<128x72xbf16>
    %c1 = arith.constant 1 : index
    %c0_6 = arith.constant 0 : index
    %c0_7 = arith.constant 0 : index
    %10 = vector.load %arg2[%c1, %c0_6, %c0_7] : memref<3x72x128xbf16, #tpu.memory_space<vmem>>, vector<1x72x128xbf16>
    %11 = vector.shape_cast %10 : vector<1x72x128xbf16> to vector<72x128xbf16>
    %cst_8 = arith.constant dense<0.000000e+00> : vector<128x128xf32>
    %12 = tpu.matmul %9, %11, %cst_8 {dimension_numbers = #tpu.dot_dimension_numbers<[1], [0], [0], [1], [0, 0, 1, 1], [], []>} : vector<128x72xbf16>, vector<72x128xbf16>, vector<128x128xf32> -> vector<128x128xf32>
    %13 = arith.addf %7, %12 : vector<128x128xf32>
    %14 = vector.extract_strided_slice %0 {offsets = [0, 2, 0], sizes = [8, 16, 72], strides = [1, 1, 1]} : vector<8x18x72xbf16> to vector<8x16x72xbf16>
    %15 = vector.shape_cast %14 : vector<8x16x72xbf16> to vector<128x72xbf16>
    %c2 = arith.constant 2 : index
    %c0_9 = arith.constant 0 : index
    %c0_10 = arith.constant 0 : index
    %16 = vector.load %arg2[%c2, %c0_9, %c0_10] : memref<3x72x128xbf16, #tpu.memory_space<vmem>>, vector<1x72x128xbf16>
    %17 = vector.shape_cast %16 : vector<1x72x128xbf16> to vector<72x128xbf16>
    %cst_11 = arith.constant dense<0.000000e+00> : vector<128x128xf32>
    %18 = tpu.matmul %15, %17, %cst_11 {dimension_numbers = #tpu.dot_dimension_numbers<[1], [0], [0], [1], [0, 0, 1, 1], [], []>} : vector<128x72xbf16>, vector<72x128xbf16>, vector<128x128xf32> -> vector<128x128xf32>
    %19 = arith.addf %13, %18 : vector<128x128xf32>
    %20 = arith.truncf %19 : vector<128x128xf32> to vector<128x128xbf16>
    %c0_12 = arith.constant 0 : index
    %c0_13 = arith.constant 0 : index
    %21 = vector.load %arg3[%c0_12, %c0_13] : memref<128x128xbf16, #tpu.memory_space<vmem>>, vector<128x128xbf16>
    tpu.vector_store %arg3[%c0_12, %c0_13], %20 {strides = array<i32>} : memref<128x128xbf16, #tpu.memory_space<vmem>>, vector<128x128xbf16>,
    %cst_14 = arith.constant dense<0.000000e+00> : vector<128xf32>
    %22 = vector.multi_reduction <add>, %19, %cst_14 [0] : vector<128x128xf32> to vector<128xf32>
    %23 = vector.shape_cast %22 : vector<128xf32> to vector<1x128xf32>
    %24 = arith.mulf %19, %19 : vector<128x128xf32>
    %cst_15 = arith.constant dense<0.000000e+00> : vector<128xf32>
    %25 = vector.multi_reduction <add>, %24, %cst_15 [0] : vector<128x128xf32> to vector<128xf32>
    %26 = vector.shape_cast %25 : vector<128xf32> to vector<1x128xf32>
    %27 = tpu.concatenate %23, %26 in 0 : vector<1x128xf32>, vector<1x128xf32> -> vector<2x128xf32>
    %c0_16 = arith.constant 0 : index
    %c0_17 = arith.constant 0 : index
    %c0_18 = arith.constant 0 : index
    %28 = vector.load %arg4[%c0_16, %c0_17, %c0_18] : memref<1x2x128xf32, #tpu.memory_space<vmem>>, vector<1x2x128xf32>
    %29 = vector.shape_cast %28 : vector<1x2x128xf32> to vector<2x128xf32>
    %30 = vector.shape_cast %27 : vector<2x128xf32> to vector<1x2x128xf32>
    tpu.vector_store %arg4[%c0_16, %c0_17, %c0_18], %30 {strides = array<i32>} : memref<1x2x128xf32, #tpu.memory_space<vmem>>, vector<1x2x128xf32>,
    return
  }
  func.func @transform_0(%arg0: i32) -> (i32, i32, i32) {
    %c0_i32 = arith.constant 0 : i32
    %c0_i32_0 = arith.constant 0 : i32
    %c0_i32_1 = arith.constant 0 : i32
    return %arg0, %c0_i32, %c0_i32_0 : i32, i32, i32
  }
  func.func @transform_1(%arg0: i32) -> (i32, i32, i32) {
    %c0_i32 = arith.constant 0 : i32
    %c0_i32_0 = arith.constant 0 : i32
    %c0_i32_1 = arith.constant 0 : i32
    %c0_i32_2 = arith.constant 0 : i32
    return %c0_i32, %c0_i32_0, %c0_i32_1 : i32, i32, i32
  }
  func.func @transform_2(%arg0: i32) -> (i32, i32) {
    %c0_i32 = arith.constant 0 : i32
    %c0_i32_0 = arith.constant 0 : i32
    return %arg0, %c0_i32 : i32, i32
  }
  func.func @transform_3(%arg0: i32) -> (i32, i32, i32) {
    %c0_i32 = arith.constant 0 : i32
    %c0_i32_0 = arith.constant 0 : i32
    %c0_i32_1 = arith.constant 0 : i32
    return %arg0, %c0_i32, %c0_i32_0 : i32, i32, i32
  }
}

module attributes {stable_mosaic.version = 11 : i64} {
  func.func @_temporal_conv_kernel(%arg0: i32, %arg1: i32, %arg2: memref<1x160x128xbf16, #tpu.memory_space<vmem>>, %arg3: memref<3x128x128xbf16, #tpu.memory_space<vmem>>, %arg4: memref<1x128xf32, #tpu.memory_space<vmem>>, %arg5: memref<1x128xf32, #tpu.memory_space<vmem>>, %arg6: memref<160x1xf32, #tpu.memory_space<vmem>>, %arg7: memref<64x128xbf16, #tpu.memory_space<vmem>>, %arg8: memref<1x2x128xf32, #tpu.memory_space<vmem>>) attributes {dimension_semantics = [#tpu.dimension_semantics<parallel>, #tpu.dimension_semantics<parallel>], iteration_bounds = array<i64: 2, 2>, scalar_prefetch = 0 : i64, scratch_operands = 0 : i64, tpu.core_type = #tpu.core_type<tc>, window_params = [{transform_indices = @transform_0, window_bounds = array<i64: 1, 160, 128>}, {pipeline_mode = #tpu.pipeline_mode<synchronous>, transform_indices = @transform_1, window_bounds = array<i64: 3, 128, 128>}, {pipeline_mode = #tpu.pipeline_mode<synchronous>, transform_indices = @transform_2, window_bounds = array<i64: 1, 128>}, {pipeline_mode = #tpu.pipeline_mode<synchronous>, transform_indices = @transform_3, window_bounds = array<i64: 1, 128>}, {pipeline_mode = #tpu.pipeline_mode<synchronous>, transform_indices = @transform_4, window_bounds = array<i64: 160, 1>}, {transform_indices = @transform_5, window_bounds = array<i64: 64, 128>}, {transform_indices = @transform_6, window_bounds = array<i64: 1, 2, 128>}]} {
    %c64_i32 = arith.constant 64 : i32
    %0 = arith.muli %arg1, %c64_i32 : i32
    %1 = tpu.assume_multiple %0, 8 : i32
    %c0 = arith.constant 0 : index
    %2 = arith.index_cast %1 : i32 to index
    %c0_0 = arith.constant 0 : index
    %3 = vector.load %arg2[%c0, %2, %c0_0] : memref<1x160x128xbf16, #tpu.memory_space<vmem>>, vector<1x96x128xbf16>
    %4 = vector.shape_cast %3 : vector<1x96x128xbf16> to vector<96x128xbf16>
    %5 = arith.extf %4 : vector<96x128xbf16> to vector<96x128xf32>
    %6 = arith.index_cast %1 : i32 to index
    %c0_1 = arith.constant 0 : index
    %7 = vector.load %arg6[%6, %c0_1] : memref<160x1xf32, #tpu.memory_space<vmem>>, vector<96x1xf32>
    %c0_2 = arith.constant 0 : index
    %c0_3 = arith.constant 0 : index
    %8 = vector.load %arg4[%c0_2, %c0_3] : memref<1x128xf32, #tpu.memory_space<vmem>>, vector<1x128xf32>
    %9 = vector.broadcast %8 : vector<1x128xf32> to vector<96x128xf32>
    %10 = arith.mulf %5, %9 : vector<96x128xf32>
    %c0_4 = arith.constant 0 : index
    %c0_5 = arith.constant 0 : index
    %11 = vector.load %arg5[%c0_4, %c0_5] : memref<1x128xf32, #tpu.memory_space<vmem>>, vector<1x128xf32>
    %12 = vector.broadcast %11 : vector<1x128xf32> to vector<96x128xf32>
    %13 = arith.addf %10, %12 : vector<96x128xf32>
    %cst = arith.constant 0.000000e+00 : f32
    %14 = vector.broadcast %cst : f32 to vector<96x128xf32>
    %15 = arith.maximumf %13, %14 : vector<96x128xf32>
    %16 = vector.broadcast %7 : vector<96x1xf32> to vector<96x128xf32>
    %17 = arith.mulf %15, %16 : vector<96x128xf32>
    %18 = arith.truncf %17 : vector<96x128xf32> to vector<96x128xbf16>
    %cst_6 = arith.constant 0.000000e+00 : f32
    %19 = vector.broadcast %cst_6 : f32 to vector<64x128xf32>
    %20 = vector.extract_strided_slice %18 {offsets = [0, 0], sizes = [64, 128], strides = [1, 1]} : vector<96x128xbf16> to vector<64x128xbf16>
    %c0_7 = arith.constant 0 : index
    %c0_8 = arith.constant 0 : index
    %c0_9 = arith.constant 0 : index
    %21 = vector.load %arg3[%c0_7, %c0_8, %c0_9] : memref<3x128x128xbf16, #tpu.memory_space<vmem>>, vector<1x128x128xbf16>
    %22 = vector.shape_cast %21 : vector<1x128x128xbf16> to vector<128x128xbf16>
    %cst_10 = arith.constant dense<0.000000e+00> : vector<64x128xf32>
    %23 = tpu.matmul %20, %22, %cst_10 {dimension_numbers = #tpu.dot_dimension_numbers<[1], [0], [0], [1], [0, 0, 1, 1], [], []>} : vector<64x128xbf16>, vector<128x128xbf16>, vector<64x128xf32> -> vector<64x128xf32>
    %24 = arith.addf %19, %23 : vector<64x128xf32>
    %25 = vector.extract_strided_slice %18 {offsets = [16, 0], sizes = [64, 128], strides = [1, 1]} : vector<96x128xbf16> to vector<64x128xbf16>
    %c1 = arith.constant 1 : index
    %c0_11 = arith.constant 0 : index
    %c0_12 = arith.constant 0 : index
    %26 = vector.load %arg3[%c1, %c0_11, %c0_12] : memref<3x128x128xbf16, #tpu.memory_space<vmem>>, vector<1x128x128xbf16>
    %27 = vector.shape_cast %26 : vector<1x128x128xbf16> to vector<128x128xbf16>
    %cst_13 = arith.constant dense<0.000000e+00> : vector<64x128xf32>
    %28 = tpu.matmul %25, %27, %cst_13 {dimension_numbers = #tpu.dot_dimension_numbers<[1], [0], [0], [1], [0, 0, 1, 1], [], []>} : vector<64x128xbf16>, vector<128x128xbf16>, vector<64x128xf32> -> vector<64x128xf32>
    %29 = arith.addf %24, %28 : vector<64x128xf32>
    %30 = vector.extract_strided_slice %18 {offsets = [32, 0], sizes = [64, 128], strides = [1, 1]} : vector<96x128xbf16> to vector<64x128xbf16>
    %c2 = arith.constant 2 : index
    %c0_14 = arith.constant 0 : index
    %c0_15 = arith.constant 0 : index
    %31 = vector.load %arg3[%c2, %c0_14, %c0_15] : memref<3x128x128xbf16, #tpu.memory_space<vmem>>, vector<1x128x128xbf16>
    %32 = vector.shape_cast %31 : vector<1x128x128xbf16> to vector<128x128xbf16>
    %cst_16 = arith.constant dense<0.000000e+00> : vector<64x128xf32>
    %33 = tpu.matmul %30, %32, %cst_16 {dimension_numbers = #tpu.dot_dimension_numbers<[1], [0], [0], [1], [0, 0, 1, 1], [], []>} : vector<64x128xbf16>, vector<128x128xbf16>, vector<64x128xf32> -> vector<64x128xf32>
    %34 = arith.addf %29, %33 : vector<64x128xf32>
    %35 = arith.truncf %34 : vector<64x128xf32> to vector<64x128xbf16>
    %c0_17 = arith.constant 0 : index
    %c0_18 = arith.constant 0 : index
    %36 = vector.load %arg7[%c0_17, %c0_18] : memref<64x128xbf16, #tpu.memory_space<vmem>>, vector<64x128xbf16>
    tpu.vector_store %arg7[%c0_17, %c0_18], %35 {strides = array<i32>} : memref<64x128xbf16, #tpu.memory_space<vmem>>, vector<64x128xbf16>,
    %cst_19 = arith.constant dense<0.000000e+00> : vector<128xf32>
    %37 = vector.multi_reduction <add>, %34, %cst_19 [0] : vector<64x128xf32> to vector<128xf32>
    %38 = vector.shape_cast %37 : vector<128xf32> to vector<1x128xf32>
    %39 = arith.mulf %34, %34 : vector<64x128xf32>
    %cst_20 = arith.constant dense<0.000000e+00> : vector<128xf32>
    %40 = vector.multi_reduction <add>, %39, %cst_20 [0] : vector<64x128xf32> to vector<128xf32>
    %41 = vector.shape_cast %40 : vector<128xf32> to vector<1x128xf32>
    %42 = tpu.concatenate %38, %41 in 0 : vector<1x128xf32>, vector<1x128xf32> -> vector<2x128xf32>
    %c0_21 = arith.constant 0 : index
    %c0_22 = arith.constant 0 : index
    %c0_23 = arith.constant 0 : index
    %43 = vector.load %arg8[%c0_21, %c0_22, %c0_23] : memref<1x2x128xf32, #tpu.memory_space<vmem>>, vector<1x2x128xf32>
    %44 = vector.shape_cast %43 : vector<1x2x128xf32> to vector<2x128xf32>
    %45 = vector.shape_cast %42 : vector<2x128xf32> to vector<1x2x128xf32>
    tpu.vector_store %arg8[%c0_21, %c0_22, %c0_23], %45 {strides = array<i32>} : memref<1x2x128xf32, #tpu.memory_space<vmem>>, vector<1x2x128xf32>,
    return
  }
  func.func @transform_0(%arg0: i32, %arg1: i32) -> (i32, i32, i32) {
    %c0_i32 = arith.constant 0 : i32
    %c0_i32_0 = arith.constant 0 : i32
    %c0_i32_1 = arith.constant 0 : i32
    return %arg0, %c0_i32, %c0_i32_0 : i32, i32, i32
  }
  func.func @transform_1(%arg0: i32, %arg1: i32) -> (i32, i32, i32) {
    %c0_i32 = arith.constant 0 : i32
    %c0_i32_0 = arith.constant 0 : i32
    %c0_i32_1 = arith.constant 0 : i32
    %c0_i32_2 = arith.constant 0 : i32
    return %c0_i32, %c0_i32_0, %c0_i32_1 : i32, i32, i32
  }
  func.func @transform_2(%arg0: i32, %arg1: i32) -> (i32, i32) {
    %c0_i32 = arith.constant 0 : i32
    %c0_i32_0 = arith.constant 0 : i32
    %c0_i32_1 = arith.constant 0 : i32
    return %c0_i32, %c0_i32_0 : i32, i32
  }
  func.func @transform_3(%arg0: i32, %arg1: i32) -> (i32, i32) {
    %c0_i32 = arith.constant 0 : i32
    %c0_i32_0 = arith.constant 0 : i32
    %c0_i32_1 = arith.constant 0 : i32
    return %c0_i32, %c0_i32_0 : i32, i32
  }
  func.func @transform_4(%arg0: i32, %arg1: i32) -> (i32, i32) {
    %c0_i32 = arith.constant 0 : i32
    %c0_i32_0 = arith.constant 0 : i32
    %c0_i32_1 = arith.constant 0 : i32
    return %c0_i32, %c0_i32_0 : i32, i32
  }
  func.func @transform_5(%arg0: i32, %arg1: i32) -> (i32, i32) {
    %c2_i32 = arith.constant 2 : i32
    %0 = arith.muli %arg0, %c2_i32 : i32
    %1 = arith.addi %0, %arg1 : i32
    %c0_i32 = arith.constant 0 : i32
    %c0_i32_0 = arith.constant 0 : i32
    return %1, %c0_i32 : i32, i32
  }
  func.func @transform_6(%arg0: i32, %arg1: i32) -> (i32, i32, i32) {
    %c2_i32 = arith.constant 2 : i32
    %0 = arith.muli %arg0, %c2_i32 : i32
    %1 = arith.addi %0, %arg1 : i32
    %c0_i32 = arith.constant 0 : i32
    %c0_i32_0 = arith.constant 0 : i32
    %c0_i32_1 = arith.constant 0 : i32
    return %1, %c0_i32, %c0_i32_0 : i32, i32, i32
  }
}

module attributes {stable_mosaic.version = 11 : i64} {
  func.func @_bn_relu_kernel(%arg0: i32, %arg1: memref<256x128xbf16, #tpu.memory_space<vmem>>, %arg2: memref<1x128xf32, #tpu.memory_space<vmem>>, %arg3: memref<1x128xf32, #tpu.memory_space<vmem>>, %arg4: memref<256x128xf32, #tpu.memory_space<vmem>>) attributes {dimension_semantics = [#tpu.dimension_semantics<parallel>], iteration_bounds = array<i64: 1>, scalar_prefetch = 0 : i64, scratch_operands = 0 : i64, tpu.core_type = #tpu.core_type<tc>, window_params = [{transform_indices = @transform_0, window_bounds = array<i64: 256, 128>}, {pipeline_mode = #tpu.pipeline_mode<synchronous>, transform_indices = @transform_1, window_bounds = array<i64: 1, 128>}, {pipeline_mode = #tpu.pipeline_mode<synchronous>, transform_indices = @transform_2, window_bounds = array<i64: 1, 128>}, {transform_indices = @transform_3, window_bounds = array<i64: 256, 128>}]} {
    %c0 = arith.constant 0 : index
    %c0_0 = arith.constant 0 : index
    %0 = vector.load %arg1[%c0, %c0_0] : memref<256x128xbf16, #tpu.memory_space<vmem>>, vector<256x128xbf16>
    %1 = arith.extf %0 : vector<256x128xbf16> to vector<256x128xf32>
    %c0_1 = arith.constant 0 : index
    %c0_2 = arith.constant 0 : index
    %2 = vector.load %arg2[%c0_1, %c0_2] : memref<1x128xf32, #tpu.memory_space<vmem>>, vector<1x128xf32>
    %3 = vector.broadcast %2 : vector<1x128xf32> to vector<256x128xf32>
    %4 = arith.mulf %1, %3 : vector<256x128xf32>
    %c0_3 = arith.constant 0 : index
    %c0_4 = arith.constant 0 : index
    %5 = vector.load %arg3[%c0_3, %c0_4] : memref<1x128xf32, #tpu.memory_space<vmem>>, vector<1x128xf32>
    %6 = vector.broadcast %5 : vector<1x128xf32> to vector<256x128xf32>
    %7 = arith.addf %4, %6 : vector<256x128xf32>
    %cst = arith.constant 0.000000e+00 : f32
    %8 = vector.broadcast %cst : f32 to vector<256x128xf32>
    %9 = arith.maximumf %7, %8 : vector<256x128xf32>
    %c0_5 = arith.constant 0 : index
    %c0_6 = arith.constant 0 : index
    %10 = vector.load %arg4[%c0_5, %c0_6] : memref<256x128xf32, #tpu.memory_space<vmem>>, vector<256x128xf32>
    tpu.vector_store %arg4[%c0_5, %c0_6], %9 {strides = array<i32>} : memref<256x128xf32, #tpu.memory_space<vmem>>, vector<256x128xf32>,
    return
  }
  func.func @transform_0(%arg0: i32) -> (i32, i32) {
    %c0_i32 = arith.constant 0 : i32
    %c0_i32_0 = arith.constant 0 : i32
    return %arg0, %c0_i32 : i32, i32
  }
  func.func @transform_1(%arg0: i32) -> (i32, i32) {
    %c0_i32 = arith.constant 0 : i32
    %c0_i32_0 = arith.constant 0 : i32
    %c0_i32_1 = arith.constant 0 : i32
    return %c0_i32, %c0_i32_0 : i32, i32
  }
  func.func @transform_2(%arg0: i32) -> (i32, i32) {
    %c0_i32 = arith.constant 0 : i32
    %c0_i32_0 = arith.constant 0 : i32
    %c0_i32_1 = arith.constant 0 : i32
    return %c0_i32, %c0_i32_0 : i32, i32
  }
  func.func @transform_3(%arg0: i32) -> (i32, i32) {
    %c0_i32 = arith.constant 0 : i32
    %c0_i32_0 = arith.constant 0 : i32
    return %arg0, %c0_i32 : i32, i32
  }
}

</mosaic_0001>

<llo_original>
// kernel: tile.28
$region0: #{tile.28}
  #allocation0 [shape = 's32[1]{0}', space=sflag, size = 0x4, scoped, tag = 'scoped memory for tile.28']
  %s0 = inlined_call_operand.vmem [shape: f32[8], index: 0, kind: input, shape index: {}]
  %s1 = inlined_call_operand.vmem [shape: f32[16,8], index: 1, kind: output, shape index: {}]
  // Predicated region
  $region2: #{tile.28} parent=0 // pred_check
    _
  $region3: #{tile.28} parent=0 // pred_check_branch
    %3 = sbr.rel (0) target = $region5
  $region4: #{tile.28} parent=0 // pred_region
    _
  $region5: #{tile.28} parent=0 // pred_fallthru
    _
  %v4 = vld [vmem:[%s0] ss:$0 sm:$0xff]
  %5 = vst [vmem:[%s1] sm:$0xff] %v4
  %s6 = scalar_lea.vmem %s1, 8
  %7 = vst [vmem:[%s6] sm:$0xff] %v4

// kernel: tile.29
$region0: #{tile.29}
  %s0 = inlined_call_operand.vmem [shape: f32[16,8], index: 0, kind: input, shape index: {}]
  %s1 = inlined_call_operand.vmem [shape: f32[1,128], index: 1, kind: output, shape index: {}]
  $region1: #{tile.29} parent=0
    #allocation0 [shape = 'u8[4096]{0}', space=vmem, size = 0x1000, scoped, tag = 'scoped mem for output reshape']
    %v2 = vld [vmem:[%s0] sm:$0x1]
    %vm3 = vcmask 64512
    %4 = vst.msk [vmem:[#allocation0] sm:$0x1] %vm3, %v2
    %s5 = scalar_lea.vmem %s0, 15
    %v6 = vld [vmem:[%s5] sm:$0x1]
    %7 = vrot.lane.b32.xlu0 %v6, 120
    %v8 = vpop.permute.xlu0 %7
    %vm9 = vcmask 1048512
    %10 = vst.msk [vmem:[#allocation0] sm:$0x1] %vm9, %v8
    %s11 = scalar_lea.vmem %s0, 14
    %v12 = vld [vmem:[%s11] sm:$0x1]
    %13 = vrot.lane.b32.xlu0 %v12, 112
    %v14 = vpop.permute.xlu0 %13
    %vm15 = vcmask 982912
    %16 = vst.msk [vmem:[#allocation0] sm:$0x1] %vm15, %v14
    %s17 = scalar_lea.vmem %s0, 13
    %v18 = vld [vmem:[%s17] sm:$0x1]
    %19 = vrot.lane.b32.xlu0 %v18, 104
    %v20 = vpop.permute.xlu0 %19
    %vm21 = vcmask 917312
    %22 = vst.msk [vmem:[#allocation0] sm:$0x1] %vm21, %v20
    %s23 = scalar_lea.vmem %s0, 12
    %v24 = vld [vmem:[%s23] sm:$0x1]
    %25 = vrot.lane.b32.xlu0 %v24, 96
    %v26 = vpop.permute.xlu0 %25
    %vm27 = vcmask 851712
    %28 = vst.msk [vmem:[#allocation0] sm:$0x1] %vm27, %v26
    %s29 = scalar_lea.vmem %s0, 11
    %v30 = vld [vmem:[%s29] sm:$0x1]
    %31 = vrot.lane.b32.xlu0 %v30, 88
    %v32 = vpop.permute.xlu0 %31
    %vm33 = vcmask 786112
    %34 = vst.msk [vmem:[#allocation0] sm:$0x1] %vm33, %v32
    %s35 = scalar_lea.vmem %s0, 10
    %v36 = vld [vmem:[%s35] sm:$0x1]
    %37 = vrot.lane.b32.xlu0 %v36, 80
    %v38 = vpop.permute.xlu0 %37
    %vm39 = vcmask 720512
    %40 = vst.msk [vmem:[#allocation0] sm:$0x1] %vm39, %v38
    %s41 = scalar_lea.vmem %s0, 9
    %v42 = vld [vmem:[%s41] sm:$0x1]
    %43 = vrot.lane.b32.xlu0 %v42, 72
    %v44 = vpop.permute.xlu0 %43
    %vm45 = vcmask 654912
    %46 = vst.msk [vmem:[#allocation0] sm:$0x1] %vm45, %v44
    %s47 = scalar_lea.vmem %s0, 8
    %v48 = vld [vmem:[%s47] sm:$0x1]
    %49 = vrot.lane.b32.xlu0 %v48, 64
    %v50 = vpop.permute.xlu0 %49
    %vm51 = vcmask 589312
    %52 = vst.msk [vmem:[#allocation0] sm:$0x1] %vm51, %v50
    %s53 = scalar_lea.vmem %s0, 7
    %v54 = vld [vmem:[%s53] sm:$0x1]
    %55 = vrot.lane.b32.xlu0 %v54, 56
    %v56 = vpop.permute.xlu0 %55
    %vm57 = vcmask 523712
    %58 = vst.msk [vmem:[#allocation0] sm:$0x1] %vm57, %v56
    %s59 = scalar_lea.vmem %s0, 6
    %v60 = vld [vmem:[%s59] sm:$0x1]
    %61 = vrot.lane.b32.xlu0 %v60, 48
    %v62 = vpop.permute.xlu0 %61
    %vm63 = vcmask 458112
    %64 = vst.msk [vmem:[#allocation0] sm:$0x1] %vm63, %v62
    %s65 = scalar_lea.vmem %s0, 5
    %v66 = vld [vmem:[%s65] sm:$0x1]
    %67 = vrot.lane.b32.xlu0 %v66, 40
    %v68 = vpop.permute.xlu0 %67
    %vm69 = vcmask 392512
    %70 = vst.msk [vmem:[#allocation0] sm:$0x1] %vm69, %v68
    %s71 = scalar_lea.vmem %s0, 4
    %v72 = vld [vmem:[%s71] sm:$0x1]
    %73 = vrot.lane.b32.xlu0 %v72, 32
    %v74 = vpop.permute.xlu0 %73
    %vm75 = vcmask 326912
    %76 = vst.msk [vmem:[#allocation0] sm:$0x1] %vm75, %v74
    %s77 = scalar_lea.vmem %s0, 3
    %v78 = vld [vmem:[%s77] sm:$0x1]
    %79 = vrot.lane.b32.xlu0 %v78, 24
    %v80 = vpop.permute.xlu0 %79
    %vm81 = vcmask 261312
    %82 = vst.msk [vmem:[#allocation0] sm:$0x1] %vm81, %v80
    %s83 = scalar_lea.vmem %s0, 2
    %v84 = vld [vmem:[%s83] sm:$0x1]
    %85 = vrot.lane.b32.xlu0 %v84, 16
    %v86 = vpop.permute.xlu0 %85
    %vm87 = vcmask 195712
    %88 = vst.msk [vmem:[#allocation0] sm:$0x1] %vm87, %v86
    %s89 = scalar_lea.vmem %s0, 1
    %v90 = vld [vmem:[%s89] sm:$0x1]
    %91 = vrot.lane.b32.xlu0 %v90, 8
    %v92 = vpop.permute.xlu0 %91
    %vm93 = vcmask 130112
    %94 = vst.msk [vmem:[#allocation0] sm:$0x1] %vm93, %v92
    %s96 = sshllo.u32 0, 1
    %v98 = vld [vmem:[#allocation0] sm:%s96]
    %s99 = sshllo.u32 0, 1
    %100 = vst [vmem:[%s1] sm:%s99] %v98

// kernel: sep_conv3d.3
$region0: #{sep_conv3d.3}
  #allocation0 [shape = 'u32[]', space=smem, size = 0x4, offset = 0x4, fixed_abs, tag = 'smem constant byte address 0x4 - core index']
  #allocation1 [shape = 'u32[144,128]{1,0:T(1,128)}', space=vmem, size = 0x12000, scoped, tag = 'internal scratch']
  %s0 = inlined_call_operand.vmem [shape: bf16[16,18,72], index: 0, kind: input, shape index: {}]
  %s1 = inlined_call_operand.vmem [shape: bf16[3,72,128], index: 1, kind: input, shape index: {}]
  %s2 = inlined_call_operand.vmem [shape: bf16[256,128], index: 2, kind: output, shape index: {0}]
  %s3 = inlined_call_operand.vmem [shape: f32[2,2,128], index: 3, kind: output, shape index: {1}]
  %4 = xla_tuple %s2, %s3
  %s5 = sld [smem:[#allocation0]]
  $region49: #{sep_conv3d.3} parent=0
    _
  %s7 = ssub.s32 1, %s5
  %s8 = scalar_select 0, %s7, %s5
  loop: start=0, step=1, limit=4
  $region2: #{sep_conv3d.3} parent=0 // loop_pre_header
    _
  $region3: #{sep_conv3d.3} parent=0 // loop_header
    %s10 = sphi 0, %s14
    %p11 = scmp.ge.s32.totalorder %s10, 4
    %s20 = sphi 0, %s22
    %s23 = sphi 0, %s20
    %s24 = sphi 0, %s23
    %s40 = sphi 0, %s24
    %s44 = sphi 0, %s44
    %s46 = sphi 0, %s44
    %s47 = sphi 0, %s46
    %s61 = sphi 0, %s47
    %s67 = sphi 0, %s69
    %s70 = sphi 0, %s67
    %s71 = sphi 0, %s70
    %s87 = sphi 0, %s71
    %s93 = sphi 0, %s95
    %s96 = sphi 0, %s93
    %s97 = sphi 0, %s96
    %s113 = sphi 0, %s97
  $region4: #{sep_conv3d.3} parent=0 // loop_header_branch
    %13 = sbr.rel (%p11) target = $region8
  $region5: #{sep_conv3d.3} parent=0 // loop_body
    %s15 = ssub.s32 %s10, 1
    %s16 = ssub.s32 %s10, 2
    %s17 = sadd.s32 %s10, 1
    %s18 = ssub.s32 %s10, %s17
    %p19 = scmp.eq.s32.totalorder %s18, 0
    %s21 = sadd.s32 %s20, 1
    %s22 = scalar_select %p19, %s20, %s21
    %p25 = pneg %p19
    %p26 = scmp.eq.s32.totalorder %s10, 1
    %p27 = por %p25, %p26
    %p28 = scmp.ne.s32.totalorder %s20, %s23
    %p29 = scmp.eq.s32.totalorder %s10, 0
    %p30 = por %p28, %p29
    %p31 = scmp.ne.s32.totalorder %s20, %s23
    %p32 = scmp.eq.s32.totalorder %s15, 1
    %p33 = por %p31, %p32
    %p34 = scmp.ne.s32.totalorder %s23, %s24
    %p35 = scmp.eq.s32.totalorder %s15, 0
    %p36 = por %p34, %p35
    %p37 = scmp.ne.s32.totalorder %s23, %s24
    %p38 = scmp.eq.s32.totalorder %s16, 1
    %p39 = por %p37, %p38
    %p41 = scmp.ne.s32.totalorder %s24, %s40
    %p42 = scmp.eq.s32.totalorder %s16, 0
    %p43 = por %p41, %p42
    %s45 = sadd.s32 %s44, 1
    %p48 = scmp.eq.s32.totalorder %s10, 1
    %p49 = scmp.ne.s32.totalorder %s44, %s46
    %p50 = scmp.eq.s32.totalorder %s10, 0
    %p51 = por %p49, %p50
    %p52 = scmp.ne.s32.totalorder %s44, %s46
    %p53 = scmp.eq.s32.totalorder %s15, 1
    %p54 = por %p52, %p53
    %p55 = scmp.ne.s32.totalorder %s46, %s47
    %p56 = scmp.eq.s32.totalorder %s15, 0
    %p57 = por %p55, %p56
    %p58 = scmp.ne.s32.totalorder %s46, %s47
    %p59 = scmp.eq.s32.totalorder %s16, 1
    %p60 = por %p58, %p59
    %p62 = scmp.ne.s32.totalorder %s47, %s61
    %p63 = scmp.eq.s32.totalorder %s16, 0
    %p64 = por %p62, %p63
    %s65 = ssub.s32 %s10, %s17
    %p66 = scmp.eq.s32.totalorder %s65, 0
    %s68 = sadd.s32 %s67, 1
    %s69 = scalar_select %p66, %s67, %s68
    %p72 = pneg %p66
    %p73 = scmp.eq.s32.totalorder %s10, 1
    %p74 = por %p72, %p73
    %p75 = scmp.ne.s32.totalorder %s67, %s70
    %p76 = scmp.eq.s32.totalorder %s10, 0
    %p77 = por %p75, %p76
    %p78 = scmp.ne.s32.totalorder %s67, %s70
    %p79 = scmp.eq.s32.totalorder %s15, 1
    %p80 = por %p78, %p79
    %p81 = scmp.ne.s32.totalorder %s70, %s71
    %p82 = scmp.eq.s32.totalorder %s15, 0
    %p83 = por %p81, %p82
    %p84 = scmp.ne.s32.totalorder %s70, %s71
    %p85 = scmp.eq.s32.totalorder %s16, 1
    %p86 = por %p84, %p85
    %p88 = scmp.ne.s32.totalorder %s71, %s87
    %p89 = scmp.eq.s32.totalorder %s16, 0
    %p90 = por %p88, %p89
    %s91 = ssub.s32 %s10, %s17
    %p92 = scmp.eq.s32.totalorder %s91, 0
    %s94 = sadd.s32 %s93, 1
    %s95 = scalar_select %p92, %s93, %s94
    %p98 = pneg %p92
    %p99 = scmp.eq.s32.totalorder %s10, 1
    %p100 = por %p98, %p99
    %p101 = scmp.ne.s32.totalorder %s93, %s96
    %p102 = scmp.eq.s32.totalorder %s10, 0
    %p103 = por %p101, %p102
    %p104 = scmp.ne.s32.totalorder %s93, %s96
    %p105 = scmp.eq.s32.totalorder %s15, 1
    %p106 = por %p104, %p105
    %p107 = scmp.ne.s32.totalorder %s96, %s97
    %p108 = scmp.eq.s32.totalorder %s15, 0
    %p109 = por %p107, %p108
    %p110 = scmp.ne.s32.totalorder %s96, %s97
    %p111 = scmp.eq.s32.totalorder %s16, 1
    %p112 = por %p110, %p111
    %p114 = scmp.ne.s32.totalorder %s97, %s113
    %p115 = scmp.eq.s32.totalorder %s16, 0
    %p116 = por %p114, %p115
    %p117 = scmp.le.s32.totalorder 1, %s10
    %p118 = scmp.lt.s32.totalorder %s10, 3
    %p119 = pnand %p117, %p118
    %p120 = pneg %p119
    // Predicated region
    $region9: #{sep_conv3d.3} parent=5 // pred_check
      _
    $region10: #{sep_conv3d.3} parent=5 // pred_check_branch
      %122 = sbr.rel (%p119) target = $region12
    $region11: #{sep_conv3d.3} parent=5 // pred_region
      %s123 = ssub.s32 %s10, 1
      // Predicated region
      $region13: #{sep_conv3d.3} parent=11 // pred_check
        %p124 = pneg %p57
      $region14: #{sep_conv3d.3} parent=11 // pred_check_branch
        %126 = sbr.rel (%p124) target = $region16
      $region15: #{sep_conv3d.3} parent=11 // pred_region
        _
      $region16: #{sep_conv3d.3} parent=11 // pred_fallthru
        _
    $region12: #{sep_conv3d.3} parent=5 // pred_fallthru
      _
    %p127 = scmp.lt.s32.totalorder %s10, 2
    // Predicated region
    $region17: #{sep_conv3d.3} parent=5 // pred_check
      %p128 = pneg %p127
    $region18: #{sep_conv3d.3} parent=5 // pred_check_branch
      %130 = sbr.rel (%p128) target = $region20
    $region19: #{sep_conv3d.3} parent=5 // pred_region
      // Predicated region
      $region21: #{sep_conv3d.3} parent=19 // pred_check
        %p131 = pneg %p30
      $region22: #{sep_conv3d.3} parent=19 // pred_check_branch
        %133 = sbr.rel (%p131) target = $region24
      $region23: #{sep_conv3d.3} parent=19 // pred_region
        %s134 = smul.u32 8, %s10
        %p135 = scmp.lt.s32.totalorder %s134, 15
        %s136 = scalar_select %p135, %s134, 15
        %s137 = smul.addr %s136, 3
        %s138 = smul.addr %s137, 4
        %s139 = scalar_lea.vmem %s0, %s138
        %s140 = smul.u32 8, %s10
      $region24: #{sep_conv3d.3} parent=19 // pred_fallthru
        _
    $region20: #{sep_conv3d.3} parent=5 // pred_fallthru
      _
    %p141 = scmp.le.s32.totalorder 1, %s10
    %p142 = scmp.lt.s32.totalorder %s10, 3
    %p143 = pnand %p141, %p142
    %p144 = pneg %p143
    // Predicated region
    $region25: #{sep_conv3d.3} parent=5 // pred_check
      _
    $region26: #{sep_conv3d.3} parent=5 // pred_check_branch
      %146 = sbr.rel (%p143) target = $region28
    $region27: #{sep_conv3d.3} parent=5 // pred_region
      %s147 = ssub.s32 %s10, 1
      %s148 = smul.u32 8, %s15
      %p149 = scmp.lt.s32.totalorder %s148, 15
      %s150 = scalar_select %p149, %s148, 15
      %s151 = smul.addr %s150, 3
      %s152 = smul.addr %s151, 4
      %s153 = scalar_lea.vmem %s0, %s152
      %p154 = pneg %p36
      %p155 = pneg %p33
      %p156 = pneg %p57
      %p157 = pneg %p54
      %p158 = pneg %p83
      %p159 = pneg %p80
      %s160 = smul.u32 16, %s15
      %p161 = scmp.lt.s32.totalorder %s160, 31
      %s162 = scalar_select %p161, %s160, 31
      %s163 = smul.addr %s162, 4
      %s164 = scalar_lea.vmem %s2, %s163
      %p165 = pneg %p109
      %p166 = pneg %p106
      %p167 = scmp.lt.s32.totalorder %s15, 1
      %s168 = scalar_select %p167, %s15, 1
      %s169 = smul.addr %s168, 2
      %s170 = scalar_lea.vmem %s3, %s169
      %s171 = smul.u32 8, %s15
      %p172 = scmp.lt.s32.totalorder %s171, 15
      %s173 = scalar_select %p172, %s171, 15
      %s174 = smul.addr %s173, 3
      %s175 = smul.addr %s174, 4
      %s176 = scalar_lea.vmem %s0, %s175
      %s177 = smul.u32 8, %s15
      %s178 = smul.u32 16, %s15
      %p179 = scmp.lt.s32.totalorder %s178, 31
      %s180 = scalar_select %p179, %s178, 31
      %s181 = smul.addr %s180, 4
      %s182 = scalar_lea.vmem %s2, %s181
      %s183 = smul.u32 16, %s15
      %p184 = scmp.lt.s32.totalorder %s15, 1
      %s185 = scalar_select %p184, %s15, 1
      %s186 = smul.addr %s185, 2
      %s187 = scalar_lea.vmem %s3, %s186
      %v189 = vld [vmem:[%s176] sm:$0xf]
      %v190 = vld [vmem:[%s176 + $0x4] sm:$0xf]
      %v191 = vld [vmem:[%s176 + $0x8] sm:$0x1]
      %v192 = vld [vmem:[%s176 + $0xc] sm:$0xf]
      %v193 = vld [vmem:[%s176 + $0x10] sm:$0xf]
      %v194 = vld [vmem:[%s176 + $0x14] sm:$0x1]
      %v195 = vld [vmem:[%s176 + $0x18] sm:$0xf]
      %v196 = vld [vmem:[%s176 + $0x1c] sm:$0xf]
      %v197 = vld [vmem:[%s176 + $0x20] sm:$0x1]
      %v198 = vld [vmem:[%s176 + $0x24] sm:$0xf]
      %v199 = vld [vmem:[%s176 + $0x28] sm:$0xf]
      %v200 = vld [vmem:[%s176 + $0x2c] sm:$0x1]
      %v201 = vld [vmem:[%s176 + $0x30] sm:$0xf]
      %v202 = vld [vmem:[%s176 + $0x34] sm:$0xf]
      %v203 = vld [vmem:[%s176 + $0x38] sm:$0x1]
      %v204 = vld [vmem:[%s176 + $0x3c] sm:$0xf]
      %v205 = vld [vmem:[%s176 + $0x40] sm:$0xf]
      %v206 = vld [vmem:[%s176 + $0x44] sm:$0x1]
      %v207 = vld [vmem:[%s176 + $0x48] sm:$0xf]
      %v208 = vld [vmem:[%s176 + $0x4c] sm:$0xf]
      %v209 = vld [vmem:[%s176 + $0x50] sm:$0x1]
      %v210 = vld [vmem:[%s176 + $0x54] sm:$0xf]
      %v211 = vld [vmem:[%s176 + $0x58] sm:$0xf]
      %v212 = vld [vmem:[%s176 + $0x5c] sm:$0x1]
      %v213 = vld [vmem:[%s1] sm:$0xf]
      %v214 = vld [vmem:[%s1 + $0x4] sm:$0xf]
      %v215 = vld [vmem:[%s1 + $0x8] sm:$0xf]
      %v216 = vld [vmem:[%s1 + $0xc] sm:$0xf]
      %v217 = vld [vmem:[%s1 + $0x10] sm:$0xf]
      %v218 = vld [vmem:[%s1 + $0x14] sm:$0xf]
      %v219 = vld [vmem:[%s1 + $0x18] sm:$0xf]
      %v220 = vld [vmem:[%s1 + $0x1c] sm:$0xf]
      %v221 = vld [vmem:[%s1 + $0x20] sm:$0xf]
      %vm222 = vsmask.f32 3328
      %vm223 = vsmask.f32 7440
      %vm224 = vmor %vm222, %vm223
      %v226 = vshrl.u32 %v189, 16
      %v228 = vrot.slane %v226, 4
      %v229 = vshll.u32 %v189, 16
      %v231 = vrot.slane %v229, 5
      %v232 = vor.u32 %v228, %v231
      %v233 = vrot.slane %v232, 4
      %v235 = vshll.u32 %v190, 16
      %v237 = vrot.slane %v235, 5
      %v238 = vsel %vm224, %v233, %v237
      %v239 = vshrl.u32 %v190, 16
      %v241 = vrot.slane %v239, 4
      %v242 = vor.u32 %v241, %v237
      %v243 = vrot.slane %v242, 4
      %v245 = vshll.u32 %v191, 16
      %v247 = vrot.slane %v245, 5
      %v248 = vsel %vm224, %v243, %v247
      %v250 = vshrl.u32 %v192, 16
      %v252 = vrot.slane %v250, 4
      %v253 = vshll.u32 %v192, 16
      %v255 = vrot.slane %v253, 5
      %v256 = vor.u32 %v252, %v255
      %v257 = vrot.slane %v256, 4
      %v259 = vshll.u32 %v193, 16
      %v261 = vrot.slane %v259, 5
      %v262 = vsel %vm224, %v257, %v261
      %v263 = vshrl.u32 %v193, 16
      %v265 = vrot.slane %v263, 4
      %v266 = vor.u32 %v265, %v261
      %v267 = vrot.slane %v266, 4
      %v269 = vshll.u32 %v194, 16
      %v271 = vrot.slane %v269, 5
      %v272 = vsel %vm224, %v267, %v271
      %v274 = vshrl.u32 %v195, 16
      %v276 = vrot.slane %v274, 4
      %v277 = vshll.u32 %v195, 16
      %v279 = vrot.slane %v277, 5
      %v280 = vor.u32 %v276, %v279
      %v281 = vrot.slane %v280, 4
      %v283 = vshll.u32 %v196, 16
      %v285 = vrot.slane %v283, 5
      %v286 = vsel %vm224, %v281, %v285
      %v287 = vshrl.u32 %v196, 16
      %v289 = vrot.slane %v287, 4
      %v290 = vor.u32 %v289, %v285
      %v291 = vrot.slane %v290, 4
      %v293 = vshll.u32 %v197, 16
      %v295 = vrot.slane %v293, 5
      %v296 = vsel %vm224, %v291, %v295
      %v298 = vshrl.u32 %v198, 16
      %v300 = vrot.slane %v298, 4
      %v301 = vshll.u32 %v198, 16
      %v303 = vrot.slane %v301, 5
      %v304 = vor.u32 %v300, %v303
      %v305 = vrot.slane %v304, 4
      %v307 = vshll.u32 %v199, 16
      %v309 = vrot.slane %v307, 5
      %v310 = vsel %vm224, %v305, %v309
      %v311 = vshrl.u32 %v199, 16
      %v313 = vrot.slane %v311, 4
      %v314 = vor.u32 %v313, %v309
      %v315 = vrot.slane %v314, 4
      %v317 = vshll.u32 %v200, 16
      %v319 = vrot.slane %v317, 5
      %v320 = vsel %vm224, %v315, %v319
      %v322 = vshrl.u32 %v201, 16
      %v324 = vrot.slane %v322, 4
      %v325 = vshll.u32 %v201, 16
      %v327 = vrot.slane %v325, 5
      %v328 = vor.u32 %v324, %v327
      %v329 = vrot.slane %v328, 4
      %v331 = vshll.u32 %v202, 16
      %v333 = vrot.slane %v331, 5
      %v334 = vsel %vm224, %v329, %v333
      %v335 = vshrl.u32 %v202, 16
      %v337 = vrot.slane %v335, 4
      %v338 = vor.u32 %v337, %v333
      %v339 = vrot.slane %v338, 4
      %v341 = vshll.u32 %v203, 16
      %v343 = vrot.slane %v341, 5
      %v344 = vsel %vm224, %v339, %v343
      %v346 = vshrl.u32 %v204, 16
      %v348 = vrot.slane %v346, 4
      %v349 = vshll.u32 %v204, 16
      %v351 = vrot.slane %v349, 5
      %v352 = vor.u32 %v348, %v351
      %v353 = vrot.slane %v352, 4
      %v355 = vshll.u32 %v205, 16
      %v357 = vrot.slane %v355, 5
      %v358 = vsel %vm224, %v353, %v357
      %v359 = vshrl.u32 %v205, 16
      %v361 = vrot.slane %v359, 4
      %v362 = vor.u32 %v361, %v357
      %v363 = vrot.slane %v362, 4
      %v365 = vshll.u32 %v206, 16
      %v367 = vrot.slane %v365, 5
      %v368 = vsel %vm224, %v363, %v367
      %v370 = vshrl.u32 %v207, 16
      %v372 = vrot.slane %v370, 4
      %v373 = vshll.u32 %v207, 16
      %v375 = vrot.slane %v373, 5
      %v376 = vor.u32 %v372, %v375
      %v377 = vrot.slane %v376, 4
      %v379 = vshll.u32 %v208, 16
      %v381 = vrot.slane %v379, 5
      %v382 = vsel %vm224, %v377, %v381
      %v383 = vshrl.u32 %v208, 16
      %v385 = vrot.slane %v383, 4
      %v386 = vor.u32 %v385, %v381
      %v387 = vrot.slane %v386, 4
      %v389 = vshll.u32 %v209, 16
      %v391 = vrot.slane %v389, 5
      %v392 = vsel %vm224, %v387, %v391
      %v394 = vshrl.u32 %v210, 16
      %v396 = vrot.slane %v394, 4
      %v397 = vshll.u32 %v210, 16
      %v399 = vrot.slane %v397, 5
      %v400 = vor.u32 %v396, %v399
      %v401 = vrot.slane %v400, 4
      %v403 = vshll.u32 %v211, 16
      %v405 = vrot.slane %v403, 5
      %v406 = vsel %vm224, %v401, %v405
      %v407 = vshrl.u32 %v211, 16
      %v409 = vrot.slane %v407, 4
      %v410 = vor.u32 %v409, %v405
      %v411 = vrot.slane %v410, 4
      %v413 = vshll.u32 %v212, 16
      %v415 = vrot.slane %v413, 5
      %v416 = vsel %vm224, %v411, %v415
      %s417 = scalar_lea.vmem %s1, 36
      %v418 = vld [vmem:[%s417] sm:$0xf]
      %v419 = vld [vmem:[%s417 + $0x4] sm:$0xf]
      %v420 = vld [vmem:[%s417 + $0x8] sm:$0xf]
      %v421 = vld [vmem:[%s417 + $0xc] sm:$0xf]
      %v422 = vld [vmem:[%s417 + $0x10] sm:$0xf]
      %v423 = vld [vmem:[%s417 + $0x14] sm:$0xf]
      %v424 = vld [vmem:[%s417 + $0x18] sm:$0xf]
      %v425 = vld [vmem:[%s417 + $0x1c] sm:$0xf]
      %v426 = vld [vmem:[%s417 + $0x20] sm:$0xf]
      %v427 = vunpack.c.l.b16 %v238
      %v428 = vunpack.c.l.b16 %v248
      %v429 = vunpack.c.l.b16 %v262
      %v430 = vunpack.c.l.b16 %v272
      %v431 = vunpack.c.l.b16 %v286
      %v432 = vunpack.c.l.b16 %v296
      %v433 = vunpack.c.l.b16 %v310
      %v434 = vunpack.c.l.b16 %v320
      %v435 = vunpack.c.l.b16 %v334
      %v436 = vunpack.c.l.b16 %v344
      %v437 = vunpack.c.l.b16 %v358
      %v438 = vunpack.c.l.b16 %v368
      %v439 = vunpack.c.l.b16 %v382
      %v440 = vunpack.c.l.b16 %v392
      %v441 = vunpack.c.l.b16 %v406
      %v442 = vunpack.c.l.b16 %v416
      %v443 = vpack.c.b16 %v428, %v427
      %v444 = vpack.c.b16 %v430, %v429
      %v445 = vpack.c.b16 %v432, %v431
      %v446 = vpack.c.b16 %v434, %v433
      %v447 = vpack.c.b16 %v436, %v435
      %v448 = vpack.c.b16 %v438, %v437
      %v449 = vpack.c.b16 %v440, %v439
      %v450 = vpack.c.b16 %v442, %v441
      %v460 = vunpack.c.l.b16 %v418
      %v461 = vunpack.c.l.b16 %v419
      %v462 = vunpack.c.l.b16 %v420
      %v463 = vunpack.c.l.b16 %v421
      %v464 = vunpack.c.l.b16 %v422
      %v465 = vunpack.c.l.b16 %v423
      %v466 = vunpack.c.l.b16 %v424
      %v467 = vunpack.c.l.b16 %v425
      %v468 = vunpack.c.l.b16 %v426
      %v469 = vpack.c.b16 %v461, %v460
      %v470 = vpack.c.b16 %v463, %v462
      %v471 = vpack.c.b16 %v465, %v464
      %v472 = vpack.c.b16 %v467, %v466
      %v473 = vpack.c.b16 %v468, %v468
      %vm478 = vcmask 588800
      %v480 = vsel %vm478, %v443, 0
      %v483 = vsel %vm478, %v444, 0
      %v486 = vsel %vm478, %v445, 0
      %v489 = vsel %vm478, %v446, 0
      %v492 = vsel %vm478, %v447, 0
      %v495 = vsel %vm478, %v448, 0
      %v498 = vsel %vm478, %v449, 0
      %v501 = vsel %vm478, %v450, 0
      %vm503 = vcmask 1043456
      %v505 = vsel %vm503, %v473, 0
      %507 = vmatprep.subr.bf16.mxu0 0
      %508 = vmatpush1.bf16.msra.mxu0 %v469
      %509 = vmatprep.subr.bf16.mxu0 0
      %510 = vmatpush1.bf16.msra.mxu0 %v470
      %511 = vmatprep.subr.bf16.mxu0 0
      %512 = vmatpush1.bf16.msra.mxu0 %v471
      %513 = vmatprep.subr.bf16.mxu0 0
      %514 = vmatpush1.bf16.msra.mxu0 %v472
      %515 = vmatprep.subr.bf16.mxu0 0
      %516 = vmatpush1.bf16.msra.mxu0 %v505
      %517 = vmatprep.subr.bf16.mxu0 0
      %518 = vmatpush1.bf16.msra.mxu0 0
      %519 = vmatprep.subr.bf16.mxu0 0
      %520 = vmatpush1.bf16.msra.mxu0 0
      %521 = vmatprep.subr.bf16.mxu0 0
      %522 = vmatpush1.bf16.msra.mxu0 0
      %523 = vmatprep.subr.bf16.mxu0 0
      %524 = vmatpush1.bf16.msra.mxu0 0
      %525 = vmatprep.subr.bf16.mxu0 0
      %526 = vmatpush1.bf16.msra.mxu0 0
      %527 = vmatprep.subr.bf16.mxu0 0
      %528 = vmatpush1.bf16.msra.mxu0 0
      %529 = vmatprep.subr.bf16.mxu0 0
      %530 = vmatpush1.bf16.msra.mxu0 0
      %531 = vmatprep.subr.bf16.mxu0 0
      %532 = vmatpush1.bf16.msra.mxu0 0
      %533 = vmatprep.subr.bf16.mxu0 0
      %534 = vmatpush1.bf16.msra.mxu0 0
      %535 = vmatprep.subr.bf16.mxu0 0
      %536 = vmatpush1.bf16.msra.mxu0 0
      %537 = vmatprep.subr.bf16.mxu0 0
      %538 = vmatpush1.bf16.msra.mxu0 0
      %539 = vmatprep.mubr.bf16.mxu0 0
      %540 = vmatmul.mubr.bf16.gmra.mrb[0].mxu0 %v480
      %v541 = vpop.f32.mrb[0].mxu0
      %v542 = vadd.f32 0.0, %v541
      %v543 = vpop.f32.mrb[0].mxu0
      %v544 = vpop.f32.mrb[0].mxu0
      %v545 = vadd.f32 0.0, %v544
      %v546 = vpop.f32.mrb[0].mxu0
      %547 = vmatprep.mubr.bf16.mxu0 0
      %548 = vmatmul.mubr.bf16.gmra.mrb[0].mxu0 %v483
      %v549 = vpop.f32.mrb[0].mxu0
      %v550 = vadd.f32 0.0, %v549
      %v551 = vpop.f32.mrb[0].mxu0
      %v552 = vpop.f32.mrb[0].mxu0
      %v553 = vadd.f32 0.0, %v552
      %v554 = vpop.f32.mrb[0].mxu0
      %555 = vmatprep.mubr.bf16.mxu0 0
      %556 = vmatmul.mubr.bf16.gmra.mrb[0].mxu0 %v486
      %v557 = vpop.f32.mrb[0].mxu0
      %v558 = vadd.f32 0.0, %v557
      %v559 = vpop.f32.mrb[0].mxu0
      %v560 = vpop.f32.mrb[0].mxu0
      %v561 = vadd.f32 0.0, %v560
      %v562 = vpop.f32.mrb[0].mxu0
      %563 = vmatprep.mubr.bf16.mxu0 0
      %564 = vmatmul.mubr.bf16.gmra.mrb[0].mxu0 %v489
      %v565 = vpop.f32.mrb[0].mxu0
      %v566 = vadd.f32 0.0, %v565
      %v567 = vpop.f32.mrb[0].mxu0
      %v568 = vpop.f32.mrb[0].mxu0
      %v569 = vadd.f32 0.0, %v568
      %v570 = vpop.f32.mrb[0].mxu0
      %571 = vmatprep.mubr.bf16.mxu0 0
      %572 = vmatmul.mubr.bf16.gmra.mrb[0].mxu0 %v492
      %v573 = vpop.f32.mrb[0].mxu0
      %v574 = vadd.f32 0.0, %v573
      %v575 = vpop.f32.mrb[0].mxu0
      %v576 = vpop.f32.mrb[0].mxu0
      %v577 = vadd.f32 0.0, %v576
      %v578 = vpop.f32.mrb[0].mxu0
      %579 = vmatprep.mubr.bf16.mxu0 0
      %580 = vmatmul.mubr.bf16.gmra.mrb[0].mxu0 %v495
      %v581 = vpop.f32.mrb[0].mxu0
      %v582 = vadd.f32 0.0, %v581
      %v583 = vpop.f32.mrb[0].mxu0
      %v584 = vpop.f32.mrb[0].mxu0
      %v585 = vadd.f32 0.0, %v584
      %v586 = vpop.f32.mrb[0].mxu0
      %587 = vmatprep.mubr.bf16.mxu0 0
      %588 = vmatmul.mubr.bf16.gmra.mrb[0].mxu0 %v498
      %v589 = vpop.f32.mrb[0].mxu0
      %v590 = vadd.f32 0.0, %v589
      %v591 = vpop.f32.mrb[0].mxu0
      %v592 = vpop.f32.mrb[0].mxu0
      %v593 = vadd.f32 0.0, %v592
      %v594 = vpop.f32.mrb[0].mxu0
      %595 = vmatprep.mubr.bf16.mxu0 0
      %596 = vmatmul.mubr.bf16.gmra.mrb[0].mxu0 %v501
      %v597 = vpop.f32.mrb[0].mxu0
      %v598 = vadd.f32 0.0, %v597
      %v599 = vpop.f32.mrb[0].mxu0
      %v600 = vpop.f32.mrb[0].mxu0
      %v601 = vadd.f32 0.0, %v600
      %v602 = vpop.f32.mrb[0].mxu0
      %603 = vdwg.mxu0
      %v620 = vunpack.c.l.b16 %v189
      %v621 = vunpack.c.l.b16 %v190
      %v622 = vunpack.c.l.b16 %v192
      %v623 = vunpack.c.l.b16 %v193
      %v624 = vunpack.c.l.b16 %v195
      %v625 = vunpack.c.l.b16 %v196
      %v626 = vunpack.c.l.b16 %v198
      %v627 = vunpack.c.l.b16 %v199
      %v628 = vunpack.c.l.b16 %v201
      %v629 = vunpack.c.l.b16 %v202
      %v630 = vunpack.c.l.b16 %v204
      %v631 = vunpack.c.l.b16 %v205
      %v632 = vunpack.c.l.b16 %v207
      %v633 = vunpack.c.l.b16 %v208
      %v634 = vunpack.c.l.b16 %v210
      %v635 = vunpack.c.l.b16 %v211
      %v636 = vpack.c.b16 %v621, %v620
      %v637 = vpack.c.b16 %v623, %v622
      %v638 = vpack.c.b16 %v625, %v624
      %v639 = vpack.c.b16 %v627, %v626
      %v640 = vpack.c.b16 %v629, %v628
      %v641 = vpack.c.b16 %v631, %v630
      %v642 = vpack.c.b16 %v633, %v632
      %v643 = vpack.c.b16 %v635, %v634
      %v653 = vunpack.c.l.b16 %v213
      %v654 = vunpack.c.l.b16 %v214
      %v655 = vunpack.c.l.b16 %v215
      %v656 = vunpack.c.l.b16 %v216
      %v657 = vunpack.c.l.b16 %v217
      %v658 = vunpack.c.l.b16 %v218
      %v659 = vunpack.c.l.b16 %v219
      %v660 = vunpack.c.l.b16 %v220
      %v661 = vunpack.c.l.b16 %v221
      %v662 = vpack.c.b16 %v654, %v653
      %v663 = vpack.c.b16 %v656, %v655
      %v664 = vpack.c.b16 %v658, %v657
      %v665 = vpack.c.b16 %v660, %v659
      %v666 = vpack.c.b16 %v661, %v661
      %v672 = vsel %vm478, %v636, 0
      %v675 = vsel %vm478, %v637, 0
      %v678 = vsel %vm478, %v638, 0
      %v681 = vsel %vm478, %v639, 0
      %v684 = vsel %vm478, %v640, 0
      %v687 = vsel %vm478, %v641, 0
      %v690 = vsel %vm478, %v642, 0
      %v693 = vsel %vm478, %v643, 0
      %v696 = vsel %vm503, %v666, 0
      %698 = vmatprep.subr.bf16.mxu0 0
      %699 = vmatpush1.bf16.msra.mxu0 %v662
      %700 = vmatprep.subr.bf16.mxu0 0
      %701 = vmatpush1.bf16.msra.mxu0 %v663
      %702 = vmatprep.subr.bf16.mxu0 0
      %703 = vmatpush1.bf16.msra.mxu0 %v664
      %704 = vmatprep.subr.bf16.mxu0 0
      %705 = vmatpush1.bf16.msra.mxu0 %v665
      %706 = vmatprep.subr.bf16.mxu0 0
      %707 = vmatpush1.bf16.msra.mxu0 %v696
      %708 = vmatprep.subr.bf16.mxu0 0
      %709 = vmatpush1.bf16.msra.mxu0 0
      %710 = vmatprep.subr.bf16.mxu0 0
      %711 = vmatpush1.bf16.msra.mxu0 0
      %712 = vmatprep.subr.bf16.mxu0 0
      %713 = vmatpush1.bf16.msra.mxu0 0
      %714 = vmatprep.subr.bf16.mxu0 0
      %715 = vmatpush1.bf16.msra.mxu0 0
      %716 = vmatprep.subr.bf16.mxu0 0
      %717 = vmatpush1.bf16.msra.mxu0 0
      %718 = vmatprep.subr.bf16.mxu0 0
      %719 = vmatpush1.bf16.msra.mxu0 0
      %720 = vmatprep.subr.bf16.mxu0 0
      %721 = vmatpush1.bf16.msra.mxu0 0
      %722 = vmatprep.subr.bf16.mxu0 0
      %723 = vmatpush1.bf16.msra.mxu0 0
      %724 = vmatprep.subr.bf16.mxu0 0
      %725 = vmatpush1.bf16.msra.mxu0 0
      %726 = vmatprep.subr.bf16.mxu0 0
      %727 = vmatpush1.bf16.msra.mxu0 0
      %728 = vmatprep.subr.bf16.mxu0 0
      %729 = vmatpush1.bf16.msra.mxu0 0
      %730 = vmatprep.mubr.bf16.mxu0 0
      %731 = vmatmul.mubr.bf16.gmra.mrb[0].mxu0 %v672
      %v732 = vpop.f32.mrb[0].mxu0
      %v733 = vadd.f32 %v542, %v732
      %v734 = vpop.f32.mrb[0].mxu0
      %v735 = vpop.f32.mrb[0].mxu0
      %v736 = vadd.f32 %v545, %v735
      %v737 = vpop.f32.mrb[0].mxu0
      %738 = vmatprep.mubr.bf16.mxu0 0
      %739 = vmatmul.mubr.bf16.gmra.mrb[0].mxu0 %v675
      %v740 = vpop.f32.mrb[0].mxu0
      %v741 = vadd.f32 %v550, %v740
      %v742 = vpop.f32.mrb[0].mxu0
      %v743 = vpop.f32.mrb[0].mxu0
      %v744 = vadd.f32 %v553, %v743
      %v745 = vpop.f32.mrb[0].mxu0
      %746 = vmatprep.mubr.bf16.mxu0 0
      %747 = vmatmul.mubr.bf16.gmra.mrb[0].mxu0 %v678
      %v748 = vpop.f32.mrb[0].mxu0
      %v749 = vadd.f32 %v558, %v748
      %v750 = vpop.f32.mrb[0].mxu0
      %v751 = vpop.f32.mrb[0].mxu0
      %v752 = vadd.f32 %v561, %v751
      %v753 = vpop.f32.mrb[0].mxu0
      %754 = vmatprep.mubr.bf16.mxu0 0
      %755 = vmatmul.mubr.bf16.gmra.mrb[0].mxu0 %v681
      %v756 = vpop.f32.mrb[0].mxu0
      %v757 = vadd.f32 %v566, %v756
      %v758 = vpop.f32.mrb[0].mxu0
      %v759 = vpop.f32.mrb[0].mxu0
      %v760 = vadd.f32 %v569, %v759
      %v761 = vpop.f32.mrb[0].mxu0
      %762 = vmatprep.mubr.bf16.mxu0 0
      %763 = vmatmul.mubr.bf16.gmra.mrb[0].mxu0 %v684
      %v764 = vpop.f32.mrb[0].mxu0
      %v765 = vadd.f32 %v574, %v764
      %v766 = vpop.f32.mrb[0].mxu0
      %v767 = vpop.f32.mrb[0].mxu0
      %v768 = vadd.f32 %v577, %v767
      %v769 = vpop.f32.mrb[0].mxu0
      %770 = vmatprep.mubr.bf16.mxu0 0
      %771 = vmatmul.mubr.bf16.gmra.mrb[0].mxu0 %v687
      %v772 = vpop.f32.mrb[0].mxu0
      %v773 = vadd.f32 %v582, %v772
      %v774 = vpop.f32.mrb[0].mxu0
      %v775 = vpop.f32.mrb[0].mxu0
      %v776 = vadd.f32 %v585, %v775
      %v777 = vpop.f32.mrb[0].mxu0
      %778 = vmatprep.mubr.bf16.mxu0 0
      %779 = vmatmul.mubr.bf16.gmra.mrb[0].mxu0 %v690
      %v780 = vpop.f32.mrb[0].mxu0
      %v781 = vadd.f32 %v590, %v780
      %v782 = vpop.f32.mrb[0].mxu0
      %v783 = vpop.f32.mrb[0].mxu0
      %v784 = vadd.f32 %v593, %v783
      %v785 = vpop.f32.mrb[0].mxu0
      %786 = vmatprep.mubr.bf16.mxu0 0
      %787 = vmatmul.mubr.bf16.gmra.mrb[0].mxu0 %v693
      %v788 = vpop.f32.mrb[0].mxu0
      %v789 = vadd.f32 %v598, %v788
      %v790 = vpop.f32.mrb[0].mxu0
      %v791 = vpop.f32.mrb[0].mxu0
      %v792 = vadd.f32 %v601, %v791
      %v793 = vpop.f32.mrb[0].mxu0
      %794 = vdwg.mxu0
      %vm803 = vcmask 1042432
      %vm804 = vcmask 1046532
      %vm805 = vmor %vm803, %vm804
      %v806 = vrot.slane %v189, 5
      %v807 = vrot.slane %v806, 4
      %v808 = vrot.slane %v190, 5
      %v809 = vsel %vm805, %v807, %v808
      %v810 = vrot.slane %v808, 4
      %v811 = vrot.slane %v191, 5
      %v812 = vsel %vm805, %v810, %v811
      %v813 = vrot.slane %v192, 5
      %v814 = vrot.slane %v813, 4
      %v815 = vrot.slane %v193, 5
      %v816 = vsel %vm805, %v814, %v815
      %v817 = vrot.slane %v815, 4
      %v818 = vrot.slane %v194, 5
      %v819 = vsel %vm805, %v817, %v818
      %v820 = vrot.slane %v195, 5
      %v821 = vrot.slane %v820, 4
      %v822 = vrot.slane %v196, 5
      %v823 = vsel %vm805, %v821, %v822
      %v824 = vrot.slane %v822, 4
      %v825 = vrot.slane %v197, 5
      %v826 = vsel %vm805, %v824, %v825
      %v827 = vrot.slane %v198, 5
      %v828 = vrot.slane %v827, 4
      %v829 = vrot.slane %v199, 5
      %v830 = vsel %vm805, %v828, %v829
      %v831 = vrot.slane %v829, 4
      %v832 = vrot.slane %v200, 5
      %v833 = vsel %vm805, %v831, %v832
      %v834 = vrot.slane %v201, 5
      %v835 = vrot.slane %v834, 4
      %v836 = vrot.slane %v202, 5
      %v837 = vsel %vm805, %v835, %v836
      %v838 = vrot.slane %v836, 4
      %v839 = vrot.slane %v203, 5
      %v840 = vsel %vm805, %v838, %v839
      %v841 = vrot.slane %v204, 5
      %v842 = vrot.slane %v841, 4
      %v843 = vrot.slane %v205, 5
      %v844 = vsel %vm805, %v842, %v843
      %v845 = vrot.slane %v843, 4
      %v846 = vrot.slane %v206, 5
      %v847 = vsel %vm805, %v845, %v846
      %v848 = vrot.slane %v207, 5
      %v849 = vrot.slane %v848, 4
      %v850 = vrot.slane %v208, 5
      %v851 = vsel %vm805, %v849, %v850
      %v852 = vrot.slane %v850, 4
      %v853 = vrot.slane %v209, 5
      %v854 = vsel %vm805, %v852, %v853
      %v855 = vrot.slane %v210, 5
      %v856 = vrot.slane %v855, 4
      %v857 = vrot.slane %v211, 5
      %v858 = vsel %vm805, %v856, %v857
      %v859 = vrot.slane %v857, 4
      %v860 = vrot.slane %v212, 5
      %v861 = vsel %vm805, %v859, %v860
      %s862 = scalar_lea.vmem %s1, 72
      %v863 = vld [vmem:[%s862] sm:$0xf]
      %v864 = vld [vmem:[%s862 + $0x4] sm:$0xf]
      %v865 = vld [vmem:[%s862 + $0x8] sm:$0xf]
      %v866 = vld [vmem:[%s862 + $0xc] sm:$0xf]
      %v867 = vld [vmem:[%s862 + $0x10] sm:$0xf]
      %v868 = vld [vmem:[%s862 + $0x14] sm:$0xf]
      %v869 = vld [vmem:[%s862 + $0x18] sm:$0xf]
      %v870 = vld [vmem:[%s862 + $0x1c] sm:$0xf]
      %v871 = vld [vmem:[%s862 + $0x20] sm:$0xf]
      %v872 = vunpack.c.l.b16 %v809
      %v873 = vunpack.c.l.b16 %v812
      %v874 = vunpack.c.l.b16 %v816
      %v875 = vunpack.c.l.b16 %v819
      %v876 = vunpack.c.l.b16 %v823
      %v877 = vunpack.c.l.b16 %v826
      %v878 = vunpack.c.l.b16 %v830
      %v879 = vunpack.c.l.b16 %v833
      %v880 = vunpack.c.l.b16 %v837
      %v881 = vunpack.c.l.b16 %v840
      %v882 = vunpack.c.l.b16 %v844
      %v883 = vunpack.c.l.b16 %v847
      %v884 = vunpack.c.l.b16 %v851
      %v885 = vunpack.c.l.b16 %v854
      %v886 = vunpack.c.l.b16 %v858
      %v887 = vunpack.c.l.b16 %v861
      %v888 = vpack.c.b16 %v873, %v872
      %v889 = vpack.c.b16 %v875, %v874
      %v890 = vpack.c.b16 %v877, %v876
      %v891 = vpack.c.b16 %v879, %v878
      %v892 = vpack.c.b16 %v881, %v880
      %v893 = vpack.c.b16 %v883, %v882
      %v894 = vpack.c.b16 %v885, %v884
      %v895 = vpack.c.b16 %v887, %v886
      %v905 = vunpack.c.l.b16 %v863
      %v906 = vunpack.c.l.b16 %v864
      %v907 = vunpack.c.l.b16 %v865
      %v908 = vunpack.c.l.b16 %v866
      %v909 = vunpack.c.l.b16 %v867
      %v910 = vunpack.c.l.b16 %v868
      %v911 = vunpack.c.l.b16 %v869
      %v912 = vunpack.c.l.b16 %v870
      %v913 = vunpack.c.l.b16 %v871
      %v914 = vpack.c.b16 %v906, %v905
      %v915 = vpack.c.b16 %v908, %v907
      %v916 = vpack.c.b16 %v910, %v909
      %v917 = vpack.c.b16 %v912, %v911
      %v918 = vpack.c.b16 %v913, %v913
      %v924 = vsel %vm478, %v888, 0
      %v927 = vsel %vm478, %v889, 0
      %v930 = vsel %vm478, %v890, 0
      %v933 = vsel %vm478, %v891, 0
      %v936 = vsel %vm478, %v892, 0
      %v939 = vsel %vm478, %v893, 0
      %v942 = vsel %vm478, %v894, 0
      %v945 = vsel %vm478, %v895, 0
      %v948 = vsel %vm503, %v918, 0
      %950 = vmatprep.subr.bf16.mxu0 0
      %951 = vmatpush1.bf16.msra.mxu0 %v914
      %952 = vmatprep.subr.bf16.mxu0 0
      %953 = vmatpush1.bf16.msra.mxu0 %v915
      %954 = vmatprep.subr.bf16.mxu0 0
      %955 = vmatpush1.bf16.msra.mxu0 %v916
      %956 = vmatprep.subr.bf16.mxu0 0
      %957 = vmatpush1.bf16.msra.mxu0 %v917
      %958 = vmatprep.subr.bf16.mxu0 0
      %959 = vmatpush1.bf16.msra.mxu0 %v948
      %960 = vmatprep.subr.bf16.mxu0 0
      %961 = vmatpush1.bf16.msra.mxu0 0
      %962 = vmatprep.subr.bf16.mxu0 0
      %963 = vmatpush1.bf16.msra.mxu0 0
      %964 = vmatprep.subr.bf16.mxu0 0
      %965 = vmatpush1.bf16.msra.mxu0 0
      %966 = vmatprep.subr.bf16.mxu0 0
      %967 = vmatpush1.bf16.msra.mxu0 0
      %968 = vmatprep.subr.bf16.mxu0 0
      %969 = vmatpush1.bf16.msra.mxu0 0
      %970 = vmatprep.subr.bf16.mxu0 0
      %971 = vmatpush1.bf16.msra.mxu0 0
      %972 = vmatprep.subr.bf16.mxu0 0
      %973 = vmatpush1.bf16.msra.mxu0 0
      %974 = vmatprep.subr.bf16.mxu0 0
      %975 = vmatpush1.bf16.msra.mxu0 0
      %976 = vmatprep.subr.bf16.mxu0 0
      %977 = vmatpush1.bf16.msra.mxu0 0
      %978 = vmatprep.subr.bf16.mxu0 0
      %979 = vmatpush1.bf16.msra.mxu0 0
      %980 = vmatprep.subr.bf16.mxu0 0
      %981 = vmatpush1.bf16.msra.mxu0 0
      %982 = vmatprep.mubr.bf16.mxu0 0
      %983 = vmatmul.mubr.bf16.gmra.mrb[0].mxu0 %v924
      %v984 = vpop.f32.mrb[0].mxu0
      %v985 = vadd.f32 0.0, %v984
      %v986 = vpop.f32.mrb[0].mxu0
      %v987 = vpop.f32.mrb[0].mxu0
      %v988 = vadd.f32 0.0, %v987
      %v989 = vpop.f32.mrb[0].mxu0
      %990 = vmatprep.mubr.bf16.mxu0 0
      %991 = vmatmul.mubr.bf16.gmra.mrb[0].mxu0 %v927
      %v992 = vpop.f32.mrb[0].mxu0
      %v993 = vadd.f32 0.0, %v992
      %v994 = vpop.f32.mrb[0].mxu0
      %v995 = vpop.f32.mrb[0].mxu0
      %v996 = vadd.f32 0.0, %v995
      %v997 = vpop.f32.mrb[0].mxu0
      %998 = vmatprep.mubr.bf16.mxu0 0
      %999 = vmatmul.mubr.bf16.gmra.mrb[0].mxu0 %v930
      %v1000 = vpop.f32.mrb[0].mxu0
      %v1001 = vadd.f32 0.0, %v1000
      %v1002 = vpop.f32.mrb[0].mxu0
      %v1003 = vpop.f32.mrb[0].mxu0
      %v1004 = vadd.f32 0.0, %v1003
      %v1005 = vpop.f32.mrb[0].mxu0
      %1006 = vmatprep.mubr.bf16.mxu0 0
      %1007 = vmatmul.mubr.bf16.gmra.mrb[0].mxu0 %v933
      %v1008 = vpop.f32.mrb[0].mxu0
      %v1009 = vadd.f32 0.0, %v1008
      %v1010 = vpop.f32.mrb[0].mxu0
      %v1011 = vpop.f32.mrb[0].mxu0
      %v1012 = vadd.f32 0.0, %v1011
      %v1013 = vpop.f32.mrb[0].mxu0
      %1014 = vmatprep.mubr.bf16.mxu0 0
      %1015 = vmatmul.mubr.bf16.gmra.mrb[0].mxu0 %v936
      %v1016 = vpop.f32.mrb[0].mxu0
      %v1017 = vadd.f32 0.0, %v1016
      %v1018 = vpop.f32.mrb[0].mxu0
      %v1019 = vpop.f32.mrb[0].mxu0
      %v1020 = vadd.f32 0.0, %v1019
      %v1021 = vpop.f32.mrb[0].mxu0
      %1022 = vmatprep.mubr.bf16.mxu0 0
      %1023 = vmatmul.mubr.bf16.gmra.mrb[0].mxu0 %v939
      %v1024 = vpop.f32.mrb[0].mxu0
      %v1025 = vadd.f32 0.0, %v1024
      %v1026 = vpop.f32.mrb[0].mxu0
      %v1027 = vpop.f32.mrb[0].mxu0
      %v1028 = vadd.f32 0.0, %v1027
      %v1029 = vpop.f32.mrb[0].mxu0
      %1030 = vmatprep.mubr.bf16.mxu0 0
      %1031 = vmatmul.mubr.bf16.gmra.mrb[0].mxu0 %v942
      %v1032 = vpop.f32.mrb[0].mxu0
      %v1033 = vadd.f32 0.0, %v1032
      %v1034 = vpop.f32.mrb[0].mxu0
      %v1035 = vpop.f32.mrb[0].mxu0
      %v1036 = vadd.f32 0.0, %v1035
      %v1037 = vpop.f32.mrb[0].mxu0
      %1038 = vmatprep.mubr.bf16.mxu0 0
      %1039 = vmatmul.mubr.bf16.gmra.mrb[0].mxu0 %v945
      %v1040 = vpop.f32.mrb[0].mxu0
      %v1041 = vadd.f32 0.0, %v1040
      %v1042 = vpop.f32.mrb[0].mxu0
      %v1043 = vpop.f32.mrb[0].mxu0
      %v1044 = vadd.f32 0.0, %v1043
      %v1045 = vpop.f32.mrb[0].mxu0
      %1046 = vdwg.mxu0
      %v1047 = vadd.f32 %v733, %v985
      %v1048 = vadd.f32 %v736, %v988
      %v1049 = vadd.f32 %v741, %v993
      %v1050 = vadd.f32 %v744, %v996
      %v1051 = vadd.f32 %v749, %v1001
      %v1052 = vadd.f32 %v752, %v1004
      %v1053 = vadd.f32 %v757, %v1009
      %v1054 = vadd.f32 %v760, %v1012
      %v1055 = vadd.f32 %v765, %v1017
      %v1056 = vadd.f32 %v768, %v1020
      %v1057 = vadd.f32 %v773, %v1025
      %v1058 = vadd.f32 %v776, %v1028
      %v1059 = vadd.f32 %v781, %v1033
      %v1060 = vadd.f32 %v784, %v1036
      %v1061 = vadd.f32 %v789, %v1041
      %v1062 = vadd.f32 %v792, %v1044
      %v1063 = vpack.c.bf16 %v1048, %v1047
      %v1064 = vpack.c.bf16 %v1050, %v1049
      %v1065 = vpack.c.bf16 %v1052, %v1051
      %v1066 = vpack.c.bf16 %v1054, %v1053
      %v1067 = vpack.c.bf16 %v1056, %v1055
      %v1068 = vpack.c.bf16 %v1058, %v1057
      %v1069 = vpack.c.bf16 %v1060, %v1059
      %v1070 = vpack.c.bf16 %v1062, %v1061
      %v1079 = vunpack.c.l.b16 %v1063
      %v1080 = vunpack.c.h.b16 %v1063
      %v1081 = vunpack.c.l.b16 %v1064
      %v1082 = vunpack.c.h.b16 %v1064
      %v1083 = vunpack.c.l.b16 %v1065
      %v1084 = vunpack.c.h.b16 %v1065
      %v1085 = vunpack.c.l.b16 %v1066
      %v1086 = vunpack.c.h.b16 %v1066
      %v1087 = vunpack.c.l.b16 %v1067
      %v1088 = vunpack.c.h.b16 %v1067
      %v1089 = vunpack.c.l.b16 %v1068
      %v1090 = vunpack.c.h.b16 %v1068
      %v1091 = vunpack.c.l.b16 %v1069
      %v1092 = vunpack.c.h.b16 %v1069
      %v1093 = vunpack.c.l.b16 %v1070
      %v1094 = vunpack.c.h.b16 %v1070
      %v1095 = vpack.c.b16 %v1079, %v1079
      %v1096 = vpack.c.b16 %v1080, %v1080
      %v1097 = vpack.c.b16 %v1081, %v1081
      %v1098 = vpack.c.b16 %v1082, %v1082
      %v1099 = vpack.c.b16 %v1083, %v1083
      %v1100 = vpack.c.b16 %v1084, %v1084
      %v1101 = vpack.c.b16 %v1085, %v1085
      %v1102 = vpack.c.b16 %v1086, %v1086
      %v1103 = vpack.c.b16 %v1087, %v1087
      %v1104 = vpack.c.b16 %v1088, %v1088
      %v1105 = vpack.c.b16 %v1089, %v1089
      %v1106 = vpack.c.b16 %v1090, %v1090
      %v1107 = vpack.c.b16 %v1091, %v1091
      %v1108 = vpack.c.b16 %v1092, %v1092
      %v1109 = vpack.c.b16 %v1093, %v1093
      %v1110 = vpack.c.b16 %v1094, %v1094
      %1127 = vst [vmem:[%s182] sm:$0xf] %v1095
      %1128 = vst [vmem:[%s182 + $0x4] sm:$0xf] %v1096
      %1129 = vst [vmem:[%s182 + $0x8] sm:$0xf] %v1097
      %1130 = vst [vmem:[%s182 + $0xc] sm:$0xf] %v1098
      %1131 = vst [vmem:[%s182 + $0x10] sm:$0xf] %v1099
      %1132 = vst [vmem:[%s182 + $0x14] sm:$0xf] %v1100
      %1133 = vst [vmem:[%s182 + $0x18] sm:$0xf] %v1101
      %1134 = vst [vmem:[%s182 + $0x1c] sm:$0xf] %v1102
      %1135 = vst [vmem:[%s182 + $0x20] sm:$0xf] %v1103
      %1136 = vst [vmem:[%s182 + $0x24] sm:$0xf] %v1104
      %1137 = vst [vmem:[%s182 + $0x28] sm:$0xf] %v1105
      %1138 = vst [vmem:[%s182 + $0x2c] sm:$0xf] %v1106
      %1139 = vst [vmem:[%s182 + $0x30] sm:$0xf] %v1107
      %1140 = vst [vmem:[%s182 + $0x34] sm:$0xf] %v1108
      %1141 = vst [vmem:[%s182 + $0x38] sm:$0xf] %v1109
      %1142 = vst [vmem:[%s182 + $0x3c] sm:$0xf] %v1110
      %v1143 = vadd.f32 %v1047, %v1048
      %v1144 = vadd.f32 %v1143, %v1049
      %v1145 = vadd.f32 %v1144, %v1050
      %v1146 = vadd.f32 %v1145, %v1051
      %v1147 = vadd.f32 %v1146, %v1052
      %v1148 = vadd.f32 %v1147, %v1053
      %v1149 = vadd.f32 %v1148, %v1054
      %v1150 = vadd.f32 %v1149, %v1055
      %v1151 = vadd.f32 %v1150, %v1056
      %v1152 = vadd.f32 %v1151, %v1057
      %v1153 = vadd.f32 %v1152, %v1058
      %v1154 = vadd.f32 %v1153, %v1059
      %v1155 = vadd.f32 %v1154, %v1060
      %v1156 = vadd.f32 %v1155, %v1061
      %v1157 = vadd.f32 %v1156, %v1062
      %v1158 = vrot.slane %v1157, 4
      %v1159 = vadd.f32 %v1157, %v1158
      %v1160 = vrot.slane %v1159, 2
      %v1161 = vadd.f32 %v1159, %v1160
      %v1162 = vrot.slane %v1161, 1
      %v1163 = vadd.f32 %v1161, %v1162
      %v1164 = vmul.f32 %v1047, %v1047
      %v1165 = vmul.f32 %v1048, %v1048
      %v1166 = vmul.f32 %v1049, %v1049
      %v1167 = vmul.f32 %v1050, %v1050
      %v1168 = vmul.f32 %v1051, %v1051
      %v1169 = vmul.f32 %v1052, %v1052
      %v1170 = vmul.f32 %v1053, %v1053
      %v1171 = vmul.f32 %v1054, %v1054
      %v1172 = vmul.f32 %v1055, %v1055
      %v1173 = vmul.f32 %v1056, %v1056
      %v1174 = vmul.f32 %v1057, %v1057
      %v1175 = vmul.f32 %v1058, %v1058
      %v1176 = vmul.f32 %v1059, %v1059
      %v1177 = vmul.f32 %v1060, %v1060
      %v1178 = vmul.f32 %v1061, %v1061
      %v1179 = vmul.f32 %v1062, %v1062
      %v1180 = vadd.f32 %v1164, %v1165
      %v1181 = vadd.f32 %v1180, %v1166
      %v1182 = vadd.f32 %v1181, %v1167
      %v1183 = vadd.f32 %v1182, %v1168
      %v1184 = vadd.f32 %v1183, %v1169
      %v1185 = vadd.f32 %v1184, %v1170
      %v1186 = vadd.f32 %v1185, %v1171
      %v1187 = vadd.f32 %v1186, %v1172
      %v1188 = vadd.f32 %v1187, %v1173
      %v1189 = vadd.f32 %v1188, %v1174
      %v1190 = vadd.f32 %v1189, %v1175
      %v1191 = vadd.f32 %v1190, %v1176
      %v1192 = vadd.f32 %v1191, %v1177
      %v1193 = vadd.f32 %v1192, %v1178
      %v1194 = vadd.f32 %v1193, %v1179
      %v1195 = vrot.slane %v1194, 4
      %v1196 = vadd.f32 %v1194, %v1195
      %v1197 = vrot.slane %v1196, 2
      %v1198 = vadd.f32 %v1196, %v1197
      %v1199 = vrot.slane %v1198, 1
      %v1200 = vadd.f32 %v1198, %v1199
      %vm1201 = vcmask 1040384
      %v1202 = vsel %vm1201, %v1163, %v1200
      %1203 = vst [vmem:[%s187] sm:$0x3] %v1202
      %s1204 = smul.u32 16, %s15
      %p1205 = scmp.lt.s32.totalorder %s1204, 31
      %s1206 = scalar_select %p1205, %s1204, 31
      %s1207 = smul.addr %s1206, 4
      %s1208 = scalar_lea.vmem %s2, %s1207
      %p1209 = scmp.lt.s32.totalorder %s15, 1
      %s1210 = scalar_select %p1209, %s15, 1
      %s1211 = smul.addr %s1210, 2
      %s1212 = scalar_lea.vmem %s3, %s1211
      // Predicated region
      $region29: #{sep_conv3d.3} parent=27 // pred_check
        %p1213 = pneg %p80
      $region30: #{sep_conv3d.3} parent=27 // pred_check_branch
        %1215 = sbr.rel (%p1213) target = $region32
      $region31: #{sep_conv3d.3} parent=27 // pred_region
        %s1216 = smul.u32 16, %s15
      $region32: #{sep_conv3d.3} parent=27 // pred_fallthru
        _
      // Predicated region
      $region33: #{sep_conv3d.3} parent=27 // pred_check
        %p1217 = pneg %p106
      $region34: #{sep_conv3d.3} parent=27 // pred_check_branch
        %1219 = sbr.rel (%p1217) target = $region36
      $region35: #{sep_conv3d.3} parent=27 // pred_region
        _
      $region36: #{sep_conv3d.3} parent=27 // pred_fallthru
        _
    $region28: #{sep_conv3d.3} parent=5 // pred_fallthru
      _
    %p1220 = scmp.le.s32.totalorder 2, %s10
    // Predicated region
    $region37: #{sep_conv3d.3} parent=5 // pred_check
      %p1221 = pneg %p1220
    $region38: #{sep_conv3d.3} parent=5 // pred_check_branch
      %1223 = sbr.rel (%p1221) target = $region40
    $region39: #{sep_conv3d.3} parent=5 // pred_region
      %s1224 = ssub.s32 %s10, 2
      // Predicated region
      $region41: #{sep_conv3d.3} parent=39 // pred_check
        %p1225 = pneg %p86
      $region42: #{sep_conv3d.3} parent=39 // pred_check_branch
        %1227 = sbr.rel (%p1225) target = $region44
      $region43: #{sep_conv3d.3} parent=39 // pred_region
        %s1228 = smul.u32 16, %s16
        %p1229 = scmp.lt.s32.totalorder %s1228, 31
        %s1230 = scalar_select %p1229, %s1228, 31
        %s1231 = smul.addr %s1230, 4
        %s1232 = scalar_lea.vmem %s2, %s1231
      $region44: #{sep_conv3d.3} parent=39 // pred_fallthru
        _
      // Predicated region
      $region45: #{sep_conv3d.3} parent=39 // pred_check
        %p1233 = pneg %p112
      $region46: #{sep_conv3d.3} parent=39 // pred_check_branch
        %1235 = sbr.rel (%p1233) target = $region48
      $region47: #{sep_conv3d.3} parent=39 // pred_region
        %p1236 = scmp.lt.s32.totalorder %s16, 1
        %s1237 = scalar_select %p1236, %s16, 1
        %s1238 = smul.addr %s1237, 2
        %s1239 = scalar_lea.vmem %s3, %s1238
      $region48: #{sep_conv3d.3} parent=39 // pred_fallthru
        _
    $region40: #{sep_conv3d.3} parent=5 // pred_fallthru
      _
  $region6: #{sep_conv3d.3} parent=0 // loop_footer
    %s14 = sadd.s32 1, %s10
  $region7: #{sep_conv3d.3} parent=0 // loop_footer_branch
    %9 = sbr.rel target = $region3
  $region8: #{sep_conv3d.3} parent=0 // loop_exit
    _

// kernel: sep_conv3d.4
$region0: #{sep_conv3d.4}
  #allocation0 [shape = 'u32[]', space=smem, size = 0x4, offset = 0x4, fixed_abs, tag = 'smem constant byte address 0x4 - core index']
  #allocation1 [shape = 'u32[144,128]{1,0:T(1,128)}', space=vmem, size = 0x12000, scoped, tag = 'internal scratch']
  %s0 = inlined_call_operand.vmem [shape: bf16[2,160,128], index: 0, kind: input, shape index: {}]
  %s1 = inlined_call_operand.vmem [shape: bf16[3,128,128], index: 1, kind: input, shape index: {}]
  %s2 = inlined_call_operand.vmem [shape: f32[1,128], index: 2, kind: input, shape index: {}]
  %s3 = inlined_call_operand.vmem [shape: f32[1,128], index: 3, kind: input, shape index: {}]
  %s4 = inlined_call_operand.vmem [shape: f32[160,1], index: 4, kind: input, shape index: {}]
  %s5 = inlined_call_operand.vmem [shape: bf16[256,128], index: 5, kind: output, shape index: {0}]
  %s6 = inlined_call_operand.vmem [shape: f32[4,2,128], index: 6, kind: output, shape index: {1}]
  %7 = xla_tuple %s5, %s6
  %s8 = sld [smem:[#allocation0]]
  $region61: #{sep_conv3d.4} parent=0
    _
  %s10 = ssub.s32 1, %s8
  %s11 = scalar_select 0, %s10, %s8
  loop: start=0, step=1, limit=6
  $region2: #{sep_conv3d.4} parent=0 // loop_pre_header
    _
  $region3: #{sep_conv3d.4} parent=0 // loop_header
    %s13 = sphi 0, %s17
    %p14 = scmp.ge.s32.totalorder %s13, 6
    %s20 = sphi 0, %s32
    %s21 = sphi 0, %s28
    %s22 = sphi 0, %s20
    %s23 = sphi 0, %s21
    %s24 = sphi 0, %s22
    %s25 = sphi 0, %s23
    %s35 = sphi 0, %s37
    %s38 = sphi 0, %s35
    %s39 = sphi 0, %s38
    %s55 = sphi 0, %s39
    %s59 = sphi 0, %s59
    %s61 = sphi 0, %s59
    %s62 = sphi 0, %s61
    %s76 = sphi 0, %s62
    %s80 = sphi 0, %s80
    %s82 = sphi 0, %s80
    %s83 = sphi 0, %s82
    %s97 = sphi 0, %s83
    %s101 = sphi 0, %s101
    %s103 = sphi 0, %s101
    %s104 = sphi 0, %s103
    %s118 = sphi 0, %s104
    %s122 = sphi 0, %s122
    %s124 = sphi 0, %s122
    %s125 = sphi 0, %s124
    %s139 = sphi 0, %s125
    %s149 = sphi 0, %s151
    %s152 = sphi 0, %s149
    %s153 = sphi 0, %s152
    %s169 = sphi 0, %s153
    %s179 = sphi 0, %s181
    %s182 = sphi 0, %s179
    %s183 = sphi 0, %s182
    %s199 = sphi 0, %s183
  $region4: #{sep_conv3d.4} parent=0 // loop_header_branch
    %16 = sbr.rel (%p14) target = $region8
  $region5: #{sep_conv3d.4} parent=0 // loop_body
    %s18 = ssub.s32 %s13, 1
    %s19 = ssub.s32 %s13, 2
    %s26 = sadd.s32 1, %s21
    %p27 = scmp.ge.s32.totalorder %s26, 2
    %s28 = scalar_select %p27, 0, %s26
    %s29 = sadd.s32 1, %s20
    %s30 = scalar_select %p27, %s29, %s20
    %p31 = scmp.ge.s32.totalorder %s30, 2
    %s32 = scalar_select %p31, 0, %s30
    %s33 = ssub.s32 %s20, %s32
    %p34 = scmp.eq.s32.totalorder %s33, 0
    %s36 = sadd.s32 %s35, 1
    %s37 = scalar_select %p34, %s35, %s36
    %p40 = pneg %p34
    %p41 = scmp.eq.s32.totalorder %s13, 3
    %p42 = por %p40, %p41
    %p43 = scmp.ne.s32.totalorder %s35, %s38
    %p44 = scmp.eq.s32.totalorder %s13, 0
    %p45 = por %p43, %p44
    %p46 = scmp.ne.s32.totalorder %s35, %s38
    %p47 = scmp.eq.s32.totalorder %s18, 3
    %p48 = por %p46, %p47
    %p49 = scmp.ne.s32.totalorder %s38, %s39
    %p50 = scmp.eq.s32.totalorder %s18, 0
    %p51 = por %p49, %p50
    %p52 = scmp.ne.s32.totalorder %s38, %s39
    %p53 = scmp.eq.s32.totalorder %s19, 3
    %p54 = por %p52, %p53
    %p56 = scmp.ne.s32.totalorder %s39, %s55
    %p57 = scmp.eq.s32.totalorder %s19, 0
    %p58 = por %p56, %p57
    %s60 = sadd.s32 %s59, 1
    %p63 = scmp.eq.s32.totalorder %s13, 3
    %p64 = scmp.ne.s32.totalorder %s59, %s61
    %p65 = scmp.eq.s32.totalorder %s13, 0
    %p66 = por %p64, %p65
    %p67 = scmp.ne.s32.totalorder %s59, %s61
    %p68 = scmp.eq.s32.totalorder %s18, 3
    %p69 = por %p67, %p68
    %p70 = scmp.ne.s32.totalorder %s61, %s62
    %p71 = scmp.eq.s32.totalorder %s18, 0
    %p72 = por %p70, %p71
    %p73 = scmp.ne.s32.totalorder %s61, %s62
    %p74 = scmp.eq.s32.totalorder %s19, 3
    %p75 = por %p73, %p74
    %p77 = scmp.ne.s32.totalorder %s62, %s76
    %p78 = scmp.eq.s32.totalorder %s19, 0
    %p79 = por %p77, %p78
    %s81 = sadd.s32 %s80, 1
    %p84 = scmp.eq.s32.totalorder %s13, 3
    %p85 = scmp.ne.s32.totalorder %s80, %s82
    %p86 = scmp.eq.s32.totalorder %s13, 0
    %p87 = por %p85, %p86
    %p88 = scmp.ne.s32.totalorder %s80, %s82
    %p89 = scmp.eq.s32.totalorder %s18, 3
    %p90 = por %p88, %p89
    %p91 = scmp.ne.s32.totalorder %s82, %s83
    %p92 = scmp.eq.s32.totalorder %s18, 0
    %p93 = por %p91, %p92
    %p94 = scmp.ne.s32.totalorder %s82, %s83
    %p95 = scmp.eq.s32.totalorder %s19, 3
    %p96 = por %p94, %p95
    %p98 = scmp.ne.s32.totalorder %s83, %s97
    %p99 = scmp.eq.s32.totalorder %s19, 0
    %p100 = por %p98, %p99
    %s102 = sadd.s32 %s101, 1
    %p105 = scmp.eq.s32.totalorder %s13, 3
    %p106 = scmp.ne.s32.totalorder %s101, %s103
    %p107 = scmp.eq.s32.totalorder %s13, 0
    %p108 = por %p106, %p107
    %p109 = scmp.ne.s32.totalorder %s101, %s103
    %p110 = scmp.eq.s32.totalorder %s18, 3
    %p111 = por %p109, %p110
    %p112 = scmp.ne.s32.totalorder %s103, %s104
    %p113 = scmp.eq.s32.totalorder %s18, 0
    %p114 = por %p112, %p113
    %p115 = scmp.ne.s32.totalorder %s103, %s104
    %p116 = scmp.eq.s32.totalorder %s19, 3
    %p117 = por %p115, %p116
    %p119 = scmp.ne.s32.totalorder %s104, %s118
    %p120 = scmp.eq.s32.totalorder %s19, 0
    %p121 = por %p119, %p120
    %s123 = sadd.s32 %s122, 1
    %p126 = scmp.eq.s32.totalorder %s13, 3
    %p127 = scmp.ne.s32.totalorder %s122, %s124
    %p128 = scmp.eq.s32.totalorder %s13, 0
    %p129 = por %p127, %p128
    %p130 = scmp.ne.s32.totalorder %s122, %s124
    %p131 = scmp.eq.s32.totalorder %s18, 3
    %p132 = por %p130, %p131
    %p133 = scmp.ne.s32.totalorder %s124, %s125
    %p134 = scmp.eq.s32.totalorder %s18, 0
    %p135 = por %p133, %p134
    %p136 = scmp.ne.s32.totalorder %s124, %s125
    %p137 = scmp.eq.s32.totalorder %s19, 3
    %p138 = por %p136, %p137
    %p140 = scmp.ne.s32.totalorder %s125, %s139
    %p141 = scmp.eq.s32.totalorder %s19, 0
    %p142 = por %p140, %p141
    %s143 = smul.u32 %s20, 2
    %s144 = sadd.s32 %s143, %s21
    %s145 = smul.u32 %s32, 2
    %s146 = sadd.s32 %s145, %s28
    %s147 = ssub.s32 %s144, %s146
    %p148 = scmp.eq.s32.totalorder %s147, 0
    %s150 = sadd.s32 %s149, 1
    %s151 = scalar_select %p148, %s149, %s150
    %p154 = pneg %p148
    %p155 = scmp.eq.s32.totalorder %s13, 3
    %p156 = por %p154, %p155
    %p157 = scmp.ne.s32.totalorder %s149, %s152
    %p158 = scmp.eq.s32.totalorder %s13, 0
    %p159 = por %p157, %p158
    %p160 = scmp.ne.s32.totalorder %s149, %s152
    %p161 = scmp.eq.s32.totalorder %s18, 3
    %p162 = por %p160, %p161
    %p163 = scmp.ne.s32.totalorder %s152, %s153
    %p164 = scmp.eq.s32.totalorder %s18, 0
    %p165 = por %p163, %p164
    %p166 = scmp.ne.s32.totalorder %s152, %s153
    %p167 = scmp.eq.s32.totalorder %s19, 3
    %p168 = por %p166, %p167
    %p170 = scmp.ne.s32.totalorder %s153, %s169
    %p171 = scmp.eq.s32.totalorder %s19, 0
    %p172 = por %p170, %p171
    %s173 = smul.u32 %s20, 2
    %s174 = sadd.s32 %s173, %s21
    %s175 = smul.u32 %s32, 2
    %s176 = sadd.s32 %s175, %s28
    %s177 = ssub.s32 %s174, %s176
    %p178 = scmp.eq.s32.totalorder %s177, 0
    %s180 = sadd.s32 %s179, 1
    %s181 = scalar_select %p178, %s179, %s180
    %p184 = pneg %p178
    %p185 = scmp.eq.s32.totalorder %s13, 3
    %p186 = por %p184, %p185
    %p187 = scmp.ne.s32.totalorder %s179, %s182
    %p188 = scmp.eq.s32.totalorder %s13, 0
    %p189 = por %p187, %p188
    %p190 = scmp.ne.s32.totalorder %s179, %s182
    %p191 = scmp.eq.s32.totalorder %s18, 3
    %p192 = por %p190, %p191
    %p193 = scmp.ne.s32.totalorder %s182, %s183
    %p194 = scmp.eq.s32.totalorder %s18, 0
    %p195 = por %p193, %p194
    %p196 = scmp.ne.s32.totalorder %s182, %s183
    %p197 = scmp.eq.s32.totalorder %s19, 3
    %p198 = por %p196, %p197
    %p200 = scmp.ne.s32.totalorder %s183, %s199
    %p201 = scmp.eq.s32.totalorder %s19, 0
    %p202 = por %p200, %p201
    %p203 = scmp.le.s32.totalorder 1, %s13
    %p204 = scmp.lt.s32.totalorder %s13, 5
    %p205 = pnand %p203, %p204
    %p206 = pneg %p205
    // Predicated region
    $region9: #{sep_conv3d.4} parent=5 // pred_check
      _
    $region10: #{sep_conv3d.4} parent=5 // pred_check_branch
      %208 = sbr.rel (%p205) target = $region12
    $region11: #{sep_conv3d.4} parent=5 // pred_region
      %s209 = ssub.s32 %s13, 1
      // Predicated region
      $region13: #{sep_conv3d.4} parent=11 // pred_check
        %p210 = pneg %p72
      $region14: #{sep_conv3d.4} parent=11 // pred_check_branch
        %212 = sbr.rel (%p210) target = $region16
      $region15: #{sep_conv3d.4} parent=11 // pred_region
        _
      $region16: #{sep_conv3d.4} parent=11 // pred_fallthru
        _
      // Predicated region
      $region17: #{sep_conv3d.4} parent=11 // pred_check
        %p213 = pneg %p93
      $region18: #{sep_conv3d.4} parent=11 // pred_check_branch
        %215 = sbr.rel (%p213) target = $region20
      $region19: #{sep_conv3d.4} parent=11 // pred_region
        _
      $region20: #{sep_conv3d.4} parent=11 // pred_fallthru
        _
      // Predicated region
      $region21: #{sep_conv3d.4} parent=11 // pred_check
        %p216 = pneg %p114
      $region22: #{sep_conv3d.4} parent=11 // pred_check_branch
        %218 = sbr.rel (%p216) target = $region24
      $region23: #{sep_conv3d.4} parent=11 // pred_region
        _
      $region24: #{sep_conv3d.4} parent=11 // pred_fallthru
        _
      // Predicated region
      $region25: #{sep_conv3d.4} parent=11 // pred_check
        %p219 = pneg %p135
      $region26: #{sep_conv3d.4} parent=11 // pred_check_branch
        %221 = sbr.rel (%p219) target = $region28
      $region27: #{sep_conv3d.4} parent=11 // pred_region
        _
      $region28: #{sep_conv3d.4} parent=11 // pred_fallthru
        _
    $region12: #{sep_conv3d.4} parent=5 // pred_fallthru
      _
    %p222 = scmp.lt.s32.totalorder %s13, 4
    // Predicated region
    $region29: #{sep_conv3d.4} parent=5 // pred_check
      %p223 = pneg %p222
    $region30: #{sep_conv3d.4} parent=5 // pred_check_branch
      %225 = sbr.rel (%p223) target = $region32
    $region31: #{sep_conv3d.4} parent=5 // pred_region
      // Predicated region
      $region33: #{sep_conv3d.4} parent=31 // pred_check
        %p226 = pneg %p45
      $region34: #{sep_conv3d.4} parent=31 // pred_check_branch
        %228 = sbr.rel (%p226) target = $region36
      $region35: #{sep_conv3d.4} parent=31 // pred_region
        %p229 = scmp.lt.s32.totalorder %s20, 1
        %s230 = scalar_select %p229, %s20, 1
        %s231 = smul.addr %s230, 20
        %s232 = smul.addr %s231, 4
        %s233 = scalar_lea.vmem %s0, %s232
      $region36: #{sep_conv3d.4} parent=31 // pred_fallthru
        _
    $region32: #{sep_conv3d.4} parent=5 // pred_fallthru
      _
    %p234 = scmp.le.s32.totalorder 1, %s13
    %p235 = scmp.lt.s32.totalorder %s13, 5
    %p236 = pnand %p234, %p235
    %p237 = pneg %p236
    // Predicated region
    $region37: #{sep_conv3d.4} parent=5 // pred_check
      _
    $region38: #{sep_conv3d.4} parent=5 // pred_check_branch
      %239 = sbr.rel (%p236) target = $region40
    $region39: #{sep_conv3d.4} parent=5 // pred_region
      %s240 = ssub.s32 %s13, 1
      %p241 = scmp.lt.s32.totalorder %s22, 1
      %s242 = scalar_select %p241, %s22, 1
      %s243 = smul.addr %s242, 20
      %s244 = smul.addr %s243, 4
      %s245 = scalar_lea.vmem %s0, %s244
      %p246 = pneg %p51
      %p247 = pneg %p48
      %p248 = pneg %p72
      %p249 = pneg %p69
      %p250 = pneg %p93
      %p251 = pneg %p90
      %p252 = pneg %p114
      %p253 = pneg %p111
      %p254 = pneg %p135
      %p255 = pneg %p132
      %p256 = pneg %p165
      %p257 = pneg %p162
      %s258 = smul.u32 %s22, 2
      %s259 = sadd.s32 %s258, %s23
      %s260 = smul.u32 8, %s259
      %p261 = scmp.lt.s32.totalorder %s260, 31
      %s262 = scalar_select %p261, %s260, 31
      %s263 = smul.addr %s262, 4
      %s264 = scalar_lea.vmem %s5, %s263
      %p265 = pneg %p195
      %p266 = pneg %p192
      %s267 = smul.u32 %s22, 2
      %s268 = sadd.s32 %s267, %s23
      %p269 = scmp.lt.s32.totalorder %s268, 3
      %s270 = scalar_select %p269, %s268, 3
      %s271 = smul.addr %s270, 2
      %s272 = scalar_lea.vmem %s6, %s271
      %p273 = scmp.lt.s32.totalorder %s22, 1
      %s274 = scalar_select %p273, %s22, 1
      %s275 = smul.addr %s274, 20
      %s276 = smul.addr %s275, 4
      %s277 = scalar_lea.vmem %s0, %s276
      %s278 = smul.u32 %s22, 2
      %s279 = sadd.s32 %s278, %s23
      %s280 = smul.u32 8, %s279
      %p281 = scmp.lt.s32.totalorder %s280, 31
      %s282 = scalar_select %p281, %s280, 31
      %s283 = smul.addr %s282, 4
      %s284 = scalar_lea.vmem %s5, %s283
      %s285 = smul.u32 %s22, 2
      %s286 = sadd.s32 %s285, %s23
      %s287 = smul.u32 8, %s286
      %s288 = smul.u32 %s22, 2
      %s289 = sadd.s32 %s288, %s23
      %p290 = scmp.lt.s32.totalorder %s289, 3
      %s291 = scalar_select %p290, %s289, 3
      %s292 = smul.addr %s291, 2
      %s293 = scalar_lea.vmem %s6, %s292
      %s294 = smul.u32 %s22, 2
      %s295 = sadd.s32 %s294, %s23
      %s297 = smul.u32 %s23, 64
      %s298 = sshra.s32 %s297, 3
      %s299 = sand.u32 %s297, 7
      %s300 = smul.addr %s298, 4
      %s301 = scalar_lea.vmem %s277, %s300
      %v302 = vld [vmem:[%s301] sm:$0xf]
      %v303 = vld [vmem:[%s301 + $0x4] sm:$0xf]
      %v304 = vld [vmem:[%s301 + $0x8] sm:$0xf]
      %v305 = vld [vmem:[%s301 + $0xc] sm:$0xf]
      %v306 = vld [vmem:[%s301 + $0x10] sm:$0xf]
      %v307 = vld [vmem:[%s301 + $0x14] sm:$0xf]
      %v308 = vld [vmem:[%s301 + $0x18] sm:$0xf]
      %v309 = vld [vmem:[%s301 + $0x1c] sm:$0xf]
      %v310 = vld [vmem:[%s301 + $0x20] sm:$0xf]
      %v311 = vld [vmem:[%s301 + $0x24] sm:$0xf]
      %v312 = vld [vmem:[%s301 + $0x28] sm:$0xf]
      %v313 = vld [vmem:[%s301 + $0x2c] sm:$0xf]
      %v314 = vunpack.c.l.bf16 %v302
      %v315 = vunpack.c.l.bf16 %v303
      %v316 = vunpack.c.l.bf16 %v304
      %v317 = vunpack.c.l.bf16 %v305
      %v318 = vunpack.c.l.bf16 %v306
      %v319 = vunpack.c.l.bf16 %v307
      %v320 = vunpack.c.l.bf16 %v308
      %v321 = vunpack.c.l.bf16 %v309
      %v322 = vunpack.c.l.bf16 %v310
      %v323 = vunpack.c.l.bf16 %v311
      %v324 = vunpack.c.l.bf16 %v312
      %v325 = vunpack.c.l.bf16 %v313
      %s326 = scalar_lea.vmem %s4, %s297
      %v327 = vld [vmem:[%s326] sm:$0xff]
      %v328 = vld [vmem:[%s326 + $0x8] sm:$0xff]
      %v329 = vld [vmem:[%s326 + $0x10] sm:$0xff]
      %v330 = vld [vmem:[%s326 + $0x18] sm:$0xff]
      %v331 = vld [vmem:[%s326 + $0x20] sm:$0xff]
      %v332 = vld [vmem:[%s326 + $0x28] sm:$0xff]
      %v333 = vld [vmem:[%s326 + $0x30] sm:$0xff]
      %v334 = vld [vmem:[%s326 + $0x38] sm:$0xff]
      %v335 = vld [vmem:[%s326 + $0x40] sm:$0xff]
      %v336 = vld [vmem:[%s326 + $0x48] sm:$0xff]
      %v337 = vld [vmem:[%s326 + $0x50] sm:$0xff]
      %v338 = vld [vmem:[%s326 + $0x58] sm:$0xff]
      %v339 = vld [vmem:[%s2] sm:$0x1]
      %v341 = vlaneseq
      %v342 = vshrl.u32 %v341, 7
      %v343 = vsub.s32 0, %v342
      %v344 = vrot.slane %v339, %v343
      %v346 = vmul.f32 %v314, %v344
      %v347 = vmul.f32 %v315, %v344
      %v348 = vmul.f32 %v316, %v344
      %v349 = vmul.f32 %v317, %v344
      %v350 = vmul.f32 %v318, %v344
      %v351 = vmul.f32 %v319, %v344
      %v352 = vmul.f32 %v320, %v344
      %v353 = vmul.f32 %v321, %v344
      %v354 = vmul.f32 %v322, %v344
      %v355 = vmul.f32 %v323, %v344
      %v356 = vmul.f32 %v324, %v344
      %v357 = vmul.f32 %v325, %v344
      %v358 = vld [vmem:[%s3] sm:$0x1]
      %v360 = vlaneseq
      %v361 = vshrl.u32 %v360, 7
      %v362 = vsub.s32 0, %v361
      %v363 = vrot.slane %v358, %v362
      %v365 = vadd.f32 %v346, %v363
      %v366 = vadd.f32 %v347, %v363
      %v367 = vadd.f32 %v348, %v363
      %v368 = vadd.f32 %v349, %v363
      %v369 = vadd.f32 %v350, %v363
      %v370 = vadd.f32 %v351, %v363
      %v371 = vadd.f32 %v352, %v363
      %v372 = vadd.f32 %v353, %v363
      %v373 = vadd.f32 %v354, %v363
      %v374 = vadd.f32 %v355, %v363
      %v375 = vadd.f32 %v356, %v363
      %v376 = vadd.f32 %v357, %v363
      %v377 = vmax.f32 %v365, 0.0
      %v378 = vmax.f32 %v366, 0.0
      %v379 = vmax.f32 %v367, 0.0
      %v380 = vmax.f32 %v368, 0.0
      %v381 = vmax.f32 %v369, 0.0
      %v382 = vmax.f32 %v370, 0.0
      %v383 = vmax.f32 %v371, 0.0
      %v384 = vmax.f32 %v372, 0.0
      %v385 = vmax.f32 %v373, 0.0
      %v386 = vmax.f32 %v374, 0.0
      %v387 = vmax.f32 %v375, 0.0
      %v388 = vmax.f32 %v376, 0.0
      %390 = vset.pattern.permute.xlu0 0
      %391 = vperm.xlu0 %390, %v327
      %v392 = vpop.permute.xlu0 %391
      %395 = vset.pattern.permute.xlu0 0
      %396 = vperm.xlu0 %395, %v328
      %v397 = vpop.permute.xlu0 %396
      %400 = vset.pattern.permute.xlu0 0
      %401 = vperm.xlu0 %400, %v329
      %v402 = vpop.permute.xlu0 %401
      %405 = vset.pattern.permute.xlu0 0
      %406 = vperm.xlu0 %405, %v330
      %v407 = vpop.permute.xlu0 %406
      %410 = vset.pattern.permute.xlu0 0
      %411 = vperm.xlu0 %410, %v331
      %v412 = vpop.permute.xlu0 %411
      %415 = vset.pattern.permute.xlu0 0
      %416 = vperm.xlu0 %415, %v332
      %v417 = vpop.permute.xlu0 %416
      %420 = vset.pattern.permute.xlu0 0
      %421 = vperm.xlu0 %420, %v333
      %v422 = vpop.permute.xlu0 %421
      %425 = vset.pattern.permute.xlu0 0
      %426 = vperm.xlu0 %425, %v334
      %v427 = vpop.permute.xlu0 %426
      %430 = vset.pattern.permute.xlu0 0
      %431 = vperm.xlu0 %430, %v335
      %v432 = vpop.permute.xlu0 %431
      %435 = vset.pattern.permute.xlu0 0
      %436 = vperm.xlu0 %435, %v336
      %v437 = vpop.permute.xlu0 %436
      %440 = vset.pattern.permute.xlu0 0
      %441 = vperm.xlu0 %440, %v337
      %v442 = vpop.permute.xlu0 %441
      %445 = vset.pattern.permute.xlu0 0
      %446 = vperm.xlu0 %445, %v338
      %v447 = vpop.permute.xlu0 %446
      %v449 = vmul.f32 %v377, %v392
      %v450 = vmul.f32 %v378, %v397
      %v451 = vmul.f32 %v379, %v402
      %v452 = vmul.f32 %v380, %v407
      %v453 = vmul.f32 %v381, %v412
      %v454 = vmul.f32 %v382, %v417
      %v455 = vmul.f32 %v383, %v422
      %v456 = vmul.f32 %v384, %v427
      %v457 = vmul.f32 %v385, %v432
      %v458 = vmul.f32 %v386, %v437
      %v459 = vmul.f32 %v387, %v442
      %v460 = vmul.f32 %v388, %v447
      %v461 = vpack.c.bf16 %v450, %v449
      %v462 = vpack.c.bf16 %v452, %v451
      %v463 = vpack.c.bf16 %v454, %v453
      %v464 = vpack.c.bf16 %v456, %v455
      %v465 = vpack.c.bf16 %v458, %v457
      %v466 = vpack.c.bf16 %v460, %v459
      %v467 = vld [vmem:[%s1] sm:$0xf]
      %v468 = vld [vmem:[%s1 + $0x4] sm:$0xf]
      %v469 = vld [vmem:[%s1 + $0x8] sm:$0xf]
      %v470 = vld [vmem:[%s1 + $0xc] sm:$0xf]
      %v471 = vld [vmem:[%s1 + $0x10] sm:$0xf]
      %v472 = vld [vmem:[%s1 + $0x14] sm:$0xf]
      %v473 = vld [vmem:[%s1 + $0x18] sm:$0xf]
      %v474 = vld [vmem:[%s1 + $0x1c] sm:$0xf]
      %v475 = vld [vmem:[%s1 + $0x20] sm:$0xf]
      %v476 = vld [vmem:[%s1 + $0x24] sm:$0xf]
      %v477 = vld [vmem:[%s1 + $0x28] sm:$0xf]
      %v478 = vld [vmem:[%s1 + $0x2c] sm:$0xf]
      %v479 = vld [vmem:[%s1 + $0x30] sm:$0xf]
      %v480 = vld [vmem:[%s1 + $0x34] sm:$0xf]
      %v481 = vld [vmem:[%s1 + $0x38] sm:$0xf]
      %v482 = vld [vmem:[%s1 + $0x3c] sm:$0xf]
      %s483 = scalar_lea.vmem %s1, 64
      %v484 = vld [vmem:[%s483] sm:$0xf]
      %v485 = vld [vmem:[%s483 + $0x4] sm:$0xf]
      %v486 = vld [vmem:[%s483 + $0x8] sm:$0xf]
      %v487 = vld [vmem:[%s483 + $0xc] sm:$0xf]
      %v488 = vld [vmem:[%s483 + $0x10] sm:$0xf]
      %v489 = vld [vmem:[%s483 + $0x14] sm:$0xf]
      %v490 = vld [vmem:[%s483 + $0x18] sm:$0xf]
      %v491 = vld [vmem:[%s483 + $0x1c] sm:$0xf]
      %v492 = vld [vmem:[%s483 + $0x20] sm:$0xf]
      %v493 = vld [vmem:[%s483 + $0x24] sm:$0xf]
      %v494 = vld [vmem:[%s483 + $0x28] sm:$0xf]
      %v495 = vld [vmem:[%s483 + $0x2c] sm:$0xf]
      %v496 = vld [vmem:[%s483 + $0x30] sm:$0xf]
      %v497 = vld [vmem:[%s483 + $0x34] sm:$0xf]
      %v498 = vld [vmem:[%s483 + $0x38] sm:$0xf]
      %v499 = vld [vmem:[%s483 + $0x3c] sm:$0xf]
      %v516 = vunpack.c.l.b16 %v484
      %v517 = vunpack.c.l.b16 %v485
      %v518 = vunpack.c.l.b16 %v486
      %v519 = vunpack.c.l.b16 %v487
      %v520 = vunpack.c.l.b16 %v488
      %v521 = vunpack.c.l.b16 %v489
      %v522 = vunpack.c.l.b16 %v490
      %v523 = vunpack.c.l.b16 %v491
      %v524 = vunpack.c.l.b16 %v492
      %v525 = vunpack.c.l.b16 %v493
      %v526 = vunpack.c.l.b16 %v494
      %v527 = vunpack.c.l.b16 %v495
      %v528 = vunpack.c.l.b16 %v496
      %v529 = vunpack.c.l.b16 %v497
      %v530 = vunpack.c.l.b16 %v498
      %v531 = vunpack.c.l.b16 %v499
      %v532 = vpack.c.b16 %v517, %v516
      %v533 = vpack.c.b16 %v519, %v518
      %v534 = vpack.c.b16 %v521, %v520
      %v535 = vpack.c.b16 %v523, %v522
      %v536 = vpack.c.b16 %v525, %v524
      %v537 = vpack.c.b16 %v527, %v526
      %v538 = vpack.c.b16 %v529, %v528
      %v539 = vpack.c.b16 %v531, %v530
      %548 = vmatprep.subr.bf16.mxu0 0
      %549 = vmatpush1.bf16.msra.mxu0 %v532
      %550 = vmatprep.subr.bf16.mxu0 0
      %551 = vmatpush1.bf16.msra.mxu0 %v533
      %552 = vmatprep.subr.bf16.mxu0 0
      %553 = vmatpush1.bf16.msra.mxu0 %v534
      %554 = vmatprep.subr.bf16.mxu0 0
      %555 = vmatpush1.bf16.msra.mxu0 %v535
      %556 = vmatprep.subr.bf16.mxu0 0
      %557 = vmatpush1.bf16.msra.mxu0 %v536
      %558 = vmatprep.subr.bf16.mxu0 0
      %559 = vmatpush1.bf16.msra.mxu0 %v537
      %560 = vmatprep.subr.bf16.mxu0 0
      %561 = vmatpush1.bf16.msra.mxu0 %v538
      %562 = vmatprep.subr.bf16.mxu0 0
      %563 = vmatpush1.bf16.msra.mxu0 %v539
      %564 = vmatprep.subr.bf16.mxu0 0
      %565 = vmatpush1.bf16.msra.mxu0 0
      %566 = vmatprep.subr.bf16.mxu0 0
      %567 = vmatpush1.bf16.msra.mxu0 0
      %568 = vmatprep.subr.bf16.mxu0 0
      %569 = vmatpush1.bf16.msra.mxu0 0
      %570 = vmatprep.subr.bf16.mxu0 0
      %571 = vmatpush1.bf16.msra.mxu0 0
      %572 = vmatprep.subr.bf16.mxu0 0
      %573 = vmatpush1.bf16.msra.mxu0 0
      %574 = vmatprep.subr.bf16.mxu0 0
      %575 = vmatpush1.bf16.msra.mxu0 0
      %576 = vmatprep.subr.bf16.mxu0 0
      %577 = vmatpush1.bf16.msra.mxu0 0
      %578 = vmatprep.subr.bf16.mxu0 0
      %579 = vmatpush1.bf16.msra.mxu0 0
      %580 = vmatprep.mubr.bf16.mxu0 0
      %581 = vmatmul.mubr.bf16.gmra.mrb[0].mxu0 %v462
      %v582 = vpop.f32.mrb[0].mxu0
      %v583 = vadd.f32 0.0, %v582
      %v584 = vpop.f32.mrb[0].mxu0
      %v585 = vpop.f32.mrb[0].mxu0
      %v586 = vadd.f32 0.0, %v585
      %v587 = vpop.f32.mrb[0].mxu0
      %588 = vmatprep.mubr.bf16.mxu0 0
      %589 = vmatmul.mubr.bf16.gmra.mrb[0].mxu0 %v463
      %v590 = vpop.f32.mrb[0].mxu0
      %v591 = vadd.f32 0.0, %v590
      %v592 = vpop.f32.mrb[0].mxu0
      %v593 = vpop.f32.mrb[0].mxu0
      %v594 = vadd.f32 0.0, %v593
      %v595 = vpop.f32.mrb[0].mxu0
      %596 = vmatprep.mubr.bf16.mxu0 0
      %597 = vmatmul.mubr.bf16.gmra.mrb[0].mxu0 %v464
      %v598 = vpop.f32.mrb[0].mxu0
      %v599 = vadd.f32 0.0, %v598
      %v600 = vpop.f32.mrb[0].mxu0
      %v601 = vpop.f32.mrb[0].mxu0
      %v602 = vadd.f32 0.0, %v601
      %v603 = vpop.f32.mrb[0].mxu0
      %604 = vmatprep.mubr.bf16.mxu0 0
      %605 = vmatmul.mubr.bf16.gmra.mrb[0].mxu0 %v465
      %v606 = vpop.f32.mrb[0].mxu0
      %v607 = vadd.f32 0.0, %v606
      %v608 = vpop.f32.mrb[0].mxu0
      %v609 = vpop.f32.mrb[0].mxu0
      %v610 = vadd.f32 0.0, %v609
      %v611 = vpop.f32.mrb[0].mxu0
      %612 = vdwg.mxu0
      %v629 = vunpack.c.l.b16 %v467
      %v630 = vunpack.c.l.b16 %v468
      %v631 = vunpack.c.l.b16 %v469
      %v632 = vunpack.c.l.b16 %v470
      %v633 = vunpack.c.l.b16 %v471
      %v634 = vunpack.c.l.b16 %v472
      %v635 = vunpack.c.l.b16 %v473
      %v636 = vunpack.c.l.b16 %v474
      %v637 = vunpack.c.l.b16 %v475
      %v638 = vunpack.c.l.b16 %v476
      %v639 = vunpack.c.l.b16 %v477
      %v640 = vunpack.c.l.b16 %v478
      %v641 = vunpack.c.l.b16 %v479
      %v642 = vunpack.c.l.b16 %v480
      %v643 = vunpack.c.l.b16 %v481
      %v644 = vunpack.c.l.b16 %v482
      %v645 = vpack.c.b16 %v630, %v629
      %v646 = vpack.c.b16 %v632, %v631
      %v647 = vpack.c.b16 %v634, %v633
      %v648 = vpack.c.b16 %v636, %v635
      %v649 = vpack.c.b16 %v638, %v637
      %v650 = vpack.c.b16 %v640, %v639
      %v651 = vpack.c.b16 %v642, %v641
      %v652 = vpack.c.b16 %v644, %v643
      %661 = vmatprep.subr.bf16.mxu0 0
      %662 = vmatpush1.bf16.msra.mxu0 %v645
      %663 = vmatprep.subr.bf16.mxu0 0
      %664 = vmatpush1.bf16.msra.mxu0 %v646
      %665 = vmatprep.subr.bf16.mxu0 0
      %666 = vmatpush1.bf16.msra.mxu0 %v647
      %667 = vmatprep.subr.bf16.mxu0 0
      %668 = vmatpush1.bf16.msra.mxu0 %v648
      %669 = vmatprep.subr.bf16.mxu0 0
      %670 = vmatpush1.bf16.msra.mxu0 %v649
      %671 = vmatprep.subr.bf16.mxu0 0
      %672 = vmatpush1.bf16.msra.mxu0 %v650
      %673 = vmatprep.subr.bf16.mxu0 0
      %674 = vmatpush1.bf16.msra.mxu0 %v651
      %675 = vmatprep.subr.bf16.mxu0 0
      %676 = vmatpush1.bf16.msra.mxu0 %v652
      %677 = vmatprep.subr.bf16.mxu0 0
      %678 = vmatpush1.bf16.msra.mxu0 0
      %679 = vmatprep.subr.bf16.mxu0 0
      %680 = vmatpush1.bf16.msra.mxu0 0
      %681 = vmatprep.subr.bf16.mxu0 0
      %682 = vmatpush1.bf16.msra.mxu0 0
      %683 = vmatprep.subr.bf16.mxu0 0
      %684 = vmatpush1.bf16.msra.mxu0 0
      %685 = vmatprep.subr.bf16.mxu0 0
      %686 = vmatpush1.bf16.msra.mxu0 0
      %687 = vmatprep.subr.bf16.mxu0 0
      %688 = vmatpush1.bf16.msra.mxu0 0
      %689 = vmatprep.subr.bf16.mxu0 0
      %690 = vmatpush1.bf16.msra.mxu0 0
      %691 = vmatprep.subr.bf16.mxu0 0
      %692 = vmatpush1.bf16.msra.mxu0 0
      %693 = vmatprep.mubr.bf16.mxu0 0
      %694 = vmatmul.mubr.bf16.gmra.mrb[0].mxu0 %v461
      %v695 = vpop.f32.mrb[0].mxu0
      %v696 = vadd.f32 %v583, %v695
      %v697 = vpop.f32.mrb[0].mxu0
      %v698 = vpop.f32.mrb[0].mxu0
      %v699 = vadd.f32 %v586, %v698
      %v700 = vpop.f32.mrb[0].mxu0
      %701 = vmatprep.mubr.bf16.mxu0 0
      %702 = vmatmul.mubr.bf16.gmra.mrb[0].mxu0 %v462
      %v703 = vpop.f32.mrb[0].mxu0
      %v704 = vadd.f32 %v591, %v703
      %v705 = vpop.f32.mrb[0].mxu0
      %v706 = vpop.f32.mrb[0].mxu0
      %v707 = vadd.f32 %v594, %v706
      %v708 = vpop.f32.mrb[0].mxu0
      %709 = vmatprep.mubr.bf16.mxu0 0
      %710 = vmatmul.mubr.bf16.gmra.mrb[0].mxu0 %v463
      %v711 = vpop.f32.mrb[0].mxu0
      %v712 = vadd.f32 %v599, %v711
      %v713 = vpop.f32.mrb[0].mxu0
      %v714 = vpop.f32.mrb[0].mxu0
      %v715 = vadd.f32 %v602, %v714
      %v716 = vpop.f32.mrb[0].mxu0
      %717 = vmatprep.mubr.bf16.mxu0 0
      %718 = vmatmul.mubr.bf16.gmra.mrb[0].mxu0 %v464
      %v719 = vpop.f32.mrb[0].mxu0
      %v720 = vadd.f32 %v607, %v719
      %v721 = vpop.f32.mrb[0].mxu0
      %v722 = vpop.f32.mrb[0].mxu0
      %v723 = vadd.f32 %v610, %v722
      %v724 = vpop.f32.mrb[0].mxu0
      %725 = vdwg.mxu0
      %s726 = scalar_lea.vmem %s1, 128
      %v727 = vld [vmem:[%s726] sm:$0xf]
      %v728 = vld [vmem:[%s726 + $0x4] sm:$0xf]
      %v729 = vld [vmem:[%s726 + $0x8] sm:$0xf]
      %v730 = vld [vmem:[%s726 + $0xc] sm:$0xf]
      %v731 = vld [vmem:[%s726 + $0x10] sm:$0xf]
      %v732 = vld [vmem:[%s726 + $0x14] sm:$0xf]
      %v733 = vld [vmem:[%s726 + $0x18] sm:$0xf]
      %v734 = vld [vmem:[%s726 + $0x1c] sm:$0xf]
      %v735 = vld [vmem:[%s726 + $0x20] sm:$0xf]
      %v736 = vld [vmem:[%s726 + $0x24] sm:$0xf]
      %v737 = vld [vmem:[%s726 + $0x28] sm:$0xf]
      %v738 = vld [vmem:[%s726 + $0x2c] sm:$0xf]
      %v739 = vld [vmem:[%s726 + $0x30] sm:$0xf]
      %v740 = vld [vmem:[%s726 + $0x34] sm:$0xf]
      %v741 = vld [vmem:[%s726 + $0x38] sm:$0xf]
      %v742 = vld [vmem:[%s726 + $0x3c] sm:$0xf]
      %v759 = vunpack.c.l.b16 %v727
      %v760 = vunpack.c.l.b16 %v728
      %v761 = vunpack.c.l.b16 %v729
      %v762 = vunpack.c.l.b16 %v730
      %v763 = vunpack.c.l.b16 %v731
      %v764 = vunpack.c.l.b16 %v732
      %v765 = vunpack.c.l.b16 %v733
      %v766 = vunpack.c.l.b16 %v734
      %v767 = vunpack.c.l.b16 %v735
      %v768 = vunpack.c.l.b16 %v736
      %v769 = vunpack.c.l.b16 %v737
      %v770 = vunpack.c.l.b16 %v738
      %v771 = vunpack.c.l.b16 %v739
      %v772 = vunpack.c.l.b16 %v740
      %v773 = vunpack.c.l.b16 %v741
      %v774 = vunpack.c.l.b16 %v742
      %v775 = vpack.c.b16 %v760, %v759
      %v776 = vpack.c.b16 %v762, %v761
      %v777 = vpack.c.b16 %v764, %v763
      %v778 = vpack.c.b16 %v766, %v765
      %v779 = vpack.c.b16 %v768, %v767
      %v780 = vpack.c.b16 %v770, %v769
      %v781 = vpack.c.b16 %v772, %v771
      %v782 = vpack.c.b16 %v774, %v773
      %791 = vmatprep.subr.bf16.mxu0 0
      %792 = vmatpush1.bf16.msra.mxu0 %v775
      %793 = vmatprep.subr.bf16.mxu0 0
      %794 = vmatpush1.bf16.msra.mxu0 %v776
      %795 = vmatprep.subr.bf16.mxu0 0
      %796 = vmatpush1.bf16.msra.mxu0 %v777
      %797 = vmatprep.subr.bf16.mxu0 0
      %798 = vmatpush1.bf16.msra.mxu0 %v778
      %799 = vmatprep.subr.bf16.mxu0 0
      %800 = vmatpush1.bf16.msra.mxu0 %v779
      %801 = vmatprep.subr.bf16.mxu0 0
      %802 = vmatpush1.bf16.msra.mxu0 %v780
      %803 = vmatprep.subr.bf16.mxu0 0
      %804 = vmatpush1.bf16.msra.mxu0 %v781
      %805 = vmatprep.subr.bf16.mxu0 0
      %806 = vmatpush1.bf16.msra.mxu0 %v782
      %807 = vmatprep.subr.bf16.mxu0 0
      %808 = vmatpush1.bf16.msra.mxu0 0
      %809 = vmatprep.subr.bf16.mxu0 0
      %810 = vmatpush1.bf16.msra.mxu0 0
      %811 = vmatprep.subr.bf16.mxu0 0
      %812 = vmatpush1.bf16.msra.mxu0 0
      %813 = vmatprep.subr.bf16.mxu0 0
      %814 = vmatpush1.bf16.msra.mxu0 0
      %815 = vmatprep.subr.bf16.mxu0 0
      %816 = vmatpush1.bf16.msra.mxu0 0
      %817 = vmatprep.subr.bf16.mxu0 0
      %818 = vmatpush1.bf16.msra.mxu0 0
      %819 = vmatprep.subr.bf16.mxu0 0
      %820 = vmatpush1.bf16.msra.mxu0 0
      %821 = vmatprep.subr.bf16.mxu0 0
      %822 = vmatpush1.bf16.msra.mxu0 0
      %823 = vmatprep.mubr.bf16.mxu0 0
      %824 = vmatmul.mubr.bf16.gmra.mrb[0].mxu0 %v463
      %v825 = vpop.f32.mrb[0].mxu0
      %v826 = vadd.f32 0.0, %v825
      %v827 = vpop.f32.mrb[0].mxu0
      %v828 = vpop.f32.mrb[0].mxu0
      %v829 = vadd.f32 0.0, %v828
      %v830 = vpop.f32.mrb[0].mxu0
      %831 = vmatprep.mubr.bf16.mxu0 0
      %832 = vmatmul.mubr.bf16.gmra.mrb[0].mxu0 %v464
      %v833 = vpop.f32.mrb[0].mxu0
      %v834 = vadd.f32 0.0, %v833
      %v835 = vpop.f32.mrb[0].mxu0
      %v836 = vpop.f32.mrb[0].mxu0
      %v837 = vadd.f32 0.0, %v836
      %v838 = vpop.f32.mrb[0].mxu0
      %839 = vmatprep.mubr.bf16.mxu0 0
      %840 = vmatmul.mubr.bf16.gmra.mrb[0].mxu0 %v465
      %v841 = vpop.f32.mrb[0].mxu0
      %v842 = vadd.f32 0.0, %v841
      %v843 = vpop.f32.mrb[0].mxu0
      %v844 = vpop.f32.mrb[0].mxu0
      %v845 = vadd.f32 0.0, %v844
      %v846 = vpop.f32.mrb[0].mxu0
      %847 = vmatprep.mubr.bf16.mxu0 0
      %848 = vmatmul.mubr.bf16.gmra.mrb[0].mxu0 %v466
      %v849 = vpop.f32.mrb[0].mxu0
      %v850 = vadd.f32 0.0, %v849
      %v851 = vpop.f32.mrb[0].mxu0
      %v852 = vpop.f32.mrb[0].mxu0
      %v853 = vadd.f32 0.0, %v852
      %v854 = vpop.f32.mrb[0].mxu0
      %855 = vdwg.mxu0
      %v856 = vadd.f32 %v696, %v826
      %v857 = vadd.f32 %v699, %v829
      %v858 = vadd.f32 %v704, %v834
      %v859 = vadd.f32 %v707, %v837
      %v860 = vadd.f32 %v712, %v842
      %v861 = vadd.f32 %v715, %v845
      %v862 = vadd.f32 %v720, %v850
      %v863 = vadd.f32 %v723, %v853
      %v864 = vpack.c.bf16 %v857, %v856
      %v865 = vpack.c.bf16 %v859, %v858
      %v866 = vpack.c.bf16 %v861, %v860
      %v867 = vpack.c.bf16 %v863, %v862
      %v872 = vunpack.c.l.b16 %v864
      %v873 = vunpack.c.h.b16 %v864
      %v874 = vunpack.c.l.b16 %v865
      %v875 = vunpack.c.h.b16 %v865
      %v876 = vunpack.c.l.b16 %v866
      %v877 = vunpack.c.h.b16 %v866
      %v878 = vunpack.c.l.b16 %v867
      %v879 = vunpack.c.h.b16 %v867
      %v880 = vpack.c.b16 %v872, %v872
      %v881 = vpack.c.b16 %v873, %v873
      %v882 = vpack.c.b16 %v874, %v874
      %v883 = vpack.c.b16 %v875, %v875
      %v884 = vpack.c.b16 %v876, %v876
      %v885 = vpack.c.b16 %v877, %v877
      %v886 = vpack.c.b16 %v878, %v878
      %v887 = vpack.c.b16 %v879, %v879
      %896 = vst [vmem:[%s284] sm:$0xf] %v880
      %897 = vst [vmem:[%s284 + $0x4] sm:$0xf] %v881
      %898 = vst [vmem:[%s284 + $0x8] sm:$0xf] %v882
      %899 = vst [vmem:[%s284 + $0xc] sm:$0xf] %v883
      %900 = vst [vmem:[%s284 + $0x10] sm:$0xf] %v884
      %901 = vst [vmem:[%s284 + $0x14] sm:$0xf] %v885
      %902 = vst [vmem:[%s284 + $0x18] sm:$0xf] %v886
      %903 = vst [vmem:[%s284 + $0x1c] sm:$0xf] %v887
      %v904 = vadd.f32 %v856, %v857
      %v905 = vadd.f32 %v904, %v858
      %v906 = vadd.f32 %v905, %v859
      %v907 = vadd.f32 %v906, %v860
      %v908 = vadd.f32 %v907, %v861
      %v909 = vadd.f32 %v908, %v862
      %v910 = vadd.f32 %v909, %v863
      %v911 = vrot.slane %v910, 4
      %v912 = vadd.f32 %v910, %v911
      %v913 = vrot.slane %v912, 2
      %v914 = vadd.f32 %v912, %v913
      %v915 = vrot.slane %v914, 1
      %v916 = vadd.f32 %v914, %v915
      %v917 = vmul.f32 %v856, %v856
      %v918 = vmul.f32 %v857, %v857
      %v919 = vmul.f32 %v858, %v858
      %v920 = vmul.f32 %v859, %v859
      %v921 = vmul.f32 %v860, %v860
      %v922 = vmul.f32 %v861, %v861
      %v923 = vmul.f32 %v862, %v862
      %v924 = vmul.f32 %v863, %v863
      %v925 = vadd.f32 %v917, %v918
      %v926 = vadd.f32 %v925, %v919
      %v927 = vadd.f32 %v926, %v920
      %v928 = vadd.f32 %v927, %v921
      %v929 = vadd.f32 %v928, %v922
      %v930 = vadd.f32 %v929, %v923
      %v931 = vadd.f32 %v930, %v924
      %v932 = vrot.slane %v931, 4
      %v933 = vadd.f32 %v931, %v932
      %v934 = vrot.slane %v933, 2
      %v935 = vadd.f32 %v933, %v934
      %v936 = vrot.slane %v935, 1
      %v937 = vadd.f32 %v935, %v936
      %vm938 = vcmask 1040384
      %v939 = vsel %vm938, %v916, %v937
      %940 = vst [vmem:[%s293] sm:$0x3] %v939
      %s941 = smul.u32 %s22, 2
      %s942 = sadd.s32 %s941, %s23
      %s943 = smul.u32 8, %s942
      %p944 = scmp.lt.s32.totalorder %s943, 31
      %s945 = scalar_select %p944, %s943, 31
      %s946 = smul.addr %s945, 4
      %s947 = scalar_lea.vmem %s5, %s946
      %s948 = smul.u32 %s22, 2
      %s949 = sadd.s32 %s948, %s23
      %p950 = scmp.lt.s32.totalorder %s949, 3
      %s951 = scalar_select %p950, %s949, 3
      %s952 = smul.addr %s951, 2
      %s953 = scalar_lea.vmem %s6, %s952
      // Predicated region
      $region41: #{sep_conv3d.4} parent=39 // pred_check
        %p954 = pneg %p162
      $region42: #{sep_conv3d.4} parent=39 // pred_check_branch
        %956 = sbr.rel (%p954) target = $region44
      $region43: #{sep_conv3d.4} parent=39 // pred_region
        %s957 = smul.u32 %s22, 2
        %s958 = sadd.s32 %s957, %s23
        %s959 = smul.u32 8, %s958
      $region44: #{sep_conv3d.4} parent=39 // pred_fallthru
        _
      // Predicated region
      $region45: #{sep_conv3d.4} parent=39 // pred_check
        %p960 = pneg %p192
      $region46: #{sep_conv3d.4} parent=39 // pred_check_branch
        %962 = sbr.rel (%p960) target = $region48
      $region47: #{sep_conv3d.4} parent=39 // pred_region
        %s963 = smul.u32 %s22, 2
        %s964 = sadd.s32 %s963, %s23
      $region48: #{sep_conv3d.4} parent=39 // pred_fallthru
        _
    $region40: #{sep_conv3d.4} parent=5 // pred_fallthru
      _
    %p965 = scmp.le.s32.totalorder 2, %s13
    // Predicated region
    $region49: #{sep_conv3d.4} parent=5 // pred_check
      %p966 = pneg %p965
    $region50: #{sep_conv3d.4} parent=5 // pred_check_branch
      %968 = sbr.rel (%p966) target = $region52
    $region51: #{sep_conv3d.4} parent=5 // pred_region
      %s969 = ssub.s32 %s13, 2
      // Predicated region
      $region53: #{sep_conv3d.4} parent=51 // pred_check
        %p970 = pneg %p168
      $region54: #{sep_conv3d.4} parent=51 // pred_check_branch
        %972 = sbr.rel (%p970) target = $region56
      $region55: #{sep_conv3d.4} parent=51 // pred_region
        %s973 = smul.u32 %s24, 2
        %s974 = sadd.s32 %s973, %s25
        %s975 = smul.u32 8, %s974
        %p976 = scmp.lt.s32.totalorder %s975, 31
        %s977 = scalar_select %p976, %s975, 31
        %s978 = smul.addr %s977, 4
        %s979 = scalar_lea.vmem %s5, %s978
      $region56: #{sep_conv3d.4} parent=51 // pred_fallthru
        _
      // Predicated region
      $region57: #{sep_conv3d.4} parent=51 // pred_check
        %p980 = pneg %p198
      $region58: #{sep_conv3d.4} parent=51 // pred_check_branch
        %982 = sbr.rel (%p980) target = $region60
      $region59: #{sep_conv3d.4} parent=51 // pred_region
        %s983 = smul.u32 %s24, 2
        %s984 = sadd.s32 %s983, %s25
        %p985 = scmp.lt.s32.totalorder %s984, 3
        %s986 = scalar_select %p985, %s984, 3
        %s987 = smul.addr %s986, 2
        %s988 = scalar_lea.vmem %s6, %s987
      $region60: #{sep_conv3d.4} parent=51 // pred_fallthru
        _
    $region52: #{sep_conv3d.4} parent=5 // pred_fallthru
      _
  $region6: #{sep_conv3d.4} parent=0 // loop_footer
    %s17 = sadd.s32 1, %s13
  $region7: #{sep_conv3d.4} parent=0 // loop_footer_branch
    %12 = sbr.rel target = $region3
  $region8: #{sep_conv3d.4} parent=0 // loop_exit
    _

// kernel: sep_conv3d.5
$region0: #{sep_conv3d.5}
  #allocation0 [shape = 'u32[]', space=smem, size = 0x4, offset = 0x4, fixed_abs, tag = 'smem constant byte address 0x4 - core index']
  #allocation1 [shape = 'u32[144,128]{1,0:T(1,128)}', space=vmem, size = 0x12000, scoped, tag = 'internal scratch']
  %s0 = inlined_call_operand.vmem [shape: bf16[256,128], index: 0, kind: input, shape index: {}]
  %s1 = inlined_call_operand.vmem [shape: f32[1,128], index: 1, kind: input, shape index: {}]
  %s2 = inlined_call_operand.vmem [shape: f32[1,128], index: 2, kind: input, shape index: {}]
  %s3 = inlined_call_operand.vmem [shape: f32[256,128], index: 3, kind: output, shape index: {}]
  %s4 = sld [smem:[#allocation0]]
  $region22: #{sep_conv3d.5} parent=0
    _
  %s6 = ssub.s32 1, %s4
  %s7 = scalar_select 0, %s6, %s4
  // Predicated region
  $region2: #{sep_conv3d.5} parent=0 // pred_check
    _
  $region3: #{sep_conv3d.5} parent=0 // pred_check_branch
    %9 = sbr.rel (0) target = $region5
  $region4: #{sep_conv3d.5} parent=0 // pred_region
    _
  $region5: #{sep_conv3d.5} parent=0 // pred_fallthru
    _
  // Predicated region
  $region6: #{sep_conv3d.5} parent=0 // pred_check
    _
  $region7: #{sep_conv3d.5} parent=0 // pred_check_branch
    %11 = sbr.rel (0) target = $region9
  $region8: #{sep_conv3d.5} parent=0 // pred_region
    _
  $region9: #{sep_conv3d.5} parent=0 // pred_fallthru
    _
  // Predicated region
  $region10: #{sep_conv3d.5} parent=0 // pred_check
    _
  $region11: #{sep_conv3d.5} parent=0 // pred_check_branch
    %13 = sbr.rel (0) target = $region13
  $region12: #{sep_conv3d.5} parent=0 // pred_region
    _
  $region13: #{sep_conv3d.5} parent=0 // pred_fallthru
    _
  %v14 = vld [vmem:[%s0] sm:$0xf]
  %v15 = vld [vmem:[%s0 + $0x4] sm:$0xf]
  %v16 = vld [vmem:[%s0 + $0x8] sm:$0xf]
  %v17 = vld [vmem:[%s0 + $0xc] sm:$0xf]
  %v18 = vld [vmem:[%s0 + $0x10] sm:$0xf]
  %v19 = vld [vmem:[%s0 + $0x14] sm:$0xf]
  %v20 = vld [vmem:[%s0 + $0x18] sm:$0xf]
  %v21 = vld [vmem:[%s0 + $0x1c] sm:$0xf]
  %v22 = vld [vmem:[%s0 + $0x20] sm:$0xf]
  %v23 = vld [vmem:[%s0 + $0x24] sm:$0xf]
  %v24 = vld [vmem:[%s0 + $0x28] sm:$0xf]
  %v25 = vld [vmem:[%s0 + $0x2c] sm:$0xf]
  %v26 = vld [vmem:[%s0 + $0x30] sm:$0xf]
  %v27 = vld [vmem:[%s0 + $0x34] sm:$0xf]
  %v28 = vld [vmem:[%s0 + $0x38] sm:$0xf]
  %v29 = vld [vmem:[%s0 + $0x3c] sm:$0xf]
  %v30 = vld [vmem:[%s0 + $0x40] sm:$0xf]
  %v31 = vld [vmem:[%s0 + $0x44] sm:$0xf]
  %v32 = vld [vmem:[%s0 + $0x48] sm:$0xf]
  %v33 = vld [vmem:[%s0 + $0x4c] sm:$0xf]
  %v34 = vld [vmem:[%s0 + $0x50] sm:$0xf]
  %v35 = vld [vmem:[%s0 + $0x54] sm:$0xf]
  %v36 = vld [vmem:[%s0 + $0x58] sm:$0xf]
  %v37 = vld [vmem:[%s0 + $0x5c] sm:$0xf]
  %v38 = vld [vmem:[%s0 + $0x60] sm:$0xf]
  %v39 = vld [vmem:[%s0 + $0x64] sm:$0xf]
  %v40 = vld [vmem:[%s0 + $0x68] sm:$0xf]
  %v41 = vld [vmem:[%s0 + $0x6c] sm:$0xf]
  %v42 = vld [vmem:[%s0 + $0x70] sm:$0xf]
  %v43 = vld [vmem:[%s0 + $0x74] sm:$0xf]
  %v44 = vld [vmem:[%s0 + $0x78] sm:$0xf]
  %v45 = vld [vmem:[%s0 + $0x7c] sm:$0xf]
  %v46 = vunpack.c.l.bf16 %v14
  %v47 = vunpack.c.l.bf16 %v15
  %v48 = vunpack.c.l.bf16 %v16
  %v49 = vunpack.c.l.bf16 %v17
  %v50 = vunpack.c.l.bf16 %v18
  %v51 = vunpack.c.l.bf16 %v19
  %v52 = vunpack.c.l.bf16 %v20
  %v53 = vunpack.c.l.bf16 %v21
  %v54 = vunpack.c.l.bf16 %v22
  %v55 = vunpack.c.l.bf16 %v23
  %v56 = vunpack.c.l.bf16 %v24
  %v57 = vunpack.c.l.bf16 %v25
  %v58 = vunpack.c.l.bf16 %v26
  %v59 = vunpack.c.l.bf16 %v27
  %v60 = vunpack.c.l.bf16 %v28
  %v61 = vunpack.c.l.bf16 %v29
  %v62 = vunpack.c.l.bf16 %v30
  %v63 = vunpack.c.l.bf16 %v31
  %v64 = vunpack.c.l.bf16 %v32
  %v65 = vunpack.c.l.bf16 %v33
  %v66 = vunpack.c.l.bf16 %v34
  %v67 = vunpack.c.l.bf16 %v35
  %v68 = vunpack.c.l.bf16 %v36
  %v69 = vunpack.c.l.bf16 %v37
  %v70 = vunpack.c.l.bf16 %v38
  %v71 = vunpack.c.l.bf16 %v39
  %v72 = vunpack.c.l.bf16 %v40
  %v73 = vunpack.c.l.bf16 %v41
  %v74 = vunpack.c.l.bf16 %v42
  %v75 = vunpack.c.l.bf16 %v43
  %v76 = vunpack.c.l.bf16 %v44
  %v77 = vunpack.c.l.bf16 %v45
  %v78 = vld [vmem:[%s1] sm:$0x1]
  %v80 = vlaneseq
  %v81 = vshrl.u32 %v80, 7
  %v82 = vsub.s32 0, %v81
  %v83 = vrot.slane %v78, %v82
  %v85 = vmul.f32 %v46, %v83
  %v86 = vmul.f32 %v47, %v83
  %v87 = vmul.f32 %v48, %v83
  %v88 = vmul.f32 %v49, %v83
  %v89 = vmul.f32 %v50, %v83
  %v90 = vmul.f32 %v51, %v83
  %v91 = vmul.f32 %v52, %v83
  %v92 = vmul.f32 %v53, %v83
  %v93 = vmul.f32 %v54, %v83
  %v94 = vmul.f32 %v55, %v83
  %v95 = vmul.f32 %v56, %v83
  %v96 = vmul.f32 %v57, %v83
  %v97 = vmul.f32 %v58, %v83
  %v98 = vmul.f32 %v59, %v83
  %v99 = vmul.f32 %v60, %v83
  %v100 = vmul.f32 %v61, %v83
  %v101 = vmul.f32 %v62, %v83
  %v102 = vmul.f32 %v63, %v83
  %v103 = vmul.f32 %v64, %v83
  %v104 = vmul.f32 %v65, %v83
  %v105 = vmul.f32 %v66, %v83
  %v106 = vmul.f32 %v67, %v83
  %v107 = vmul.f32 %v68, %v83
  %v108 = vmul.f32 %v69, %v83
  %v109 = vmul.f32 %v70, %v83
  %v110 = vmul.f32 %v71, %v83
  %v111 = vmul.f32 %v72, %v83
  %v112 = vmul.f32 %v73, %v83
  %v113 = vmul.f32 %v74, %v83
  %v114 = vmul.f32 %v75, %v83
  %v115 = vmul.f32 %v76, %v83
  %v116 = vmul.f32 %v77, %v83
  %v117 = vld [vmem:[%s2] sm:$0x1]
  %v119 = vlaneseq
  %v120 = vshrl.u32 %v119, 7
  %v121 = vsub.s32 0, %v120
  %v122 = vrot.slane %v117, %v121
  %v124 = vadd.f32 %v85, %v122
  %v125 = vadd.f32 %v86, %v122
  %v126 = vadd.f32 %v87, %v122
  %v127 = vadd.f32 %v88, %v122
  %v128 = vadd.f32 %v89, %v122
  %v129 = vadd.f32 %v90, %v122
  %v130 = vadd.f32 %v91, %v122
  %v131 = vadd.f32 %v92, %v122
  %v132 = vadd.f32 %v93, %v122
  %v133 = vadd.f32 %v94, %v122
  %v134 = vadd.f32 %v95, %v122
  %v135 = vadd.f32 %v96, %v122
  %v136 = vadd.f32 %v97, %v122
  %v137 = vadd.f32 %v98, %v122
  %v138 = vadd.f32 %v99, %v122
  %v139 = vadd.f32 %v100, %v122
  %v140 = vadd.f32 %v101, %v122
  %v141 = vadd.f32 %v102, %v122
  %v142 = vadd.f32 %v103, %v122
  %v143 = vadd.f32 %v104, %v122
  %v144 = vadd.f32 %v105, %v122
  %v145 = vadd.f32 %v106, %v122
  %v146 = vadd.f32 %v107, %v122
  %v147 = vadd.f32 %v108, %v122
  %v148 = vadd.f32 %v109, %v122
  %v149 = vadd.f32 %v110, %v122
  %v150 = vadd.f32 %v111, %v122
  %v151 = vadd.f32 %v112, %v122
  %v152 = vadd.f32 %v113, %v122
  %v153 = vadd.f32 %v114, %v122
  %v154 = vadd.f32 %v115, %v122
  %v155 = vadd.f32 %v116, %v122
  %v156 = vmax.f32 %v124, 0.0
  %v157 = vmax.f32 %v125, 0.0
  %v158 = vmax.f32 %v126, 0.0
  %v159 = vmax.f32 %v127, 0.0
  %v160 = vmax.f32 %v128, 0.0
  %v161 = vmax.f32 %v129, 0.0
  %v162 = vmax.f32 %v130, 0.0
  %v163 = vmax.f32 %v131, 0.0
  %v164 = vmax.f32 %v132, 0.0
  %v165 = vmax.f32 %v133, 0.0
  %v166 = vmax.f32 %v134, 0.0
  %v167 = vmax.f32 %v135, 0.0
  %v168 = vmax.f32 %v136, 0.0
  %v169 = vmax.f32 %v137, 0.0
  %v170 = vmax.f32 %v138, 0.0
  %v171 = vmax.f32 %v139, 0.0
  %v172 = vmax.f32 %v140, 0.0
  %v173 = vmax.f32 %v141, 0.0
  %v174 = vmax.f32 %v142, 0.0
  %v175 = vmax.f32 %v143, 0.0
  %v176 = vmax.f32 %v144, 0.0
  %v177 = vmax.f32 %v145, 0.0
  %v178 = vmax.f32 %v146, 0.0
  %v179 = vmax.f32 %v147, 0.0
  %v180 = vmax.f32 %v148, 0.0
  %v181 = vmax.f32 %v149, 0.0
  %v182 = vmax.f32 %v150, 0.0
  %v183 = vmax.f32 %v151, 0.0
  %v184 = vmax.f32 %v152, 0.0
  %v185 = vmax.f32 %v153, 0.0
  %v186 = vmax.f32 %v154, 0.0
  %v187 = vmax.f32 %v155, 0.0
  %188 = vst [vmem:[%s3] sm:$0xff] %v156
  %189 = vst [vmem:[%s3 + $0x8] sm:$0xff] %v157
  %190 = vst [vmem:[%s3 + $0x10] sm:$0xff] %v158
  %191 = vst [vmem:[%s3 + $0x18] sm:$0xff] %v159
  %192 = vst [vmem:[%s3 + $0x20] sm:$0xff] %v160
  %193 = vst [vmem:[%s3 + $0x28] sm:$0xff] %v161
  %194 = vst [vmem:[%s3 + $0x30] sm:$0xff] %v162
  %195 = vst [vmem:[%s3 + $0x38] sm:$0xff] %v163
  %196 = vst [vmem:[%s3 + $0x40] sm:$0xff] %v164
  %197 = vst [vmem:[%s3 + $0x48] sm:$0xff] %v165
  %198 = vst [vmem:[%s3 + $0x50] sm:$0xff] %v166
  %199 = vst [vmem:[%s3 + $0x58] sm:$0xff] %v167
  %200 = vst [vmem:[%s3 + $0x60] sm:$0xff] %v168
  %201 = vst [vmem:[%s3 + $0x68] sm:$0xff] %v169
  %202 = vst [vmem:[%s3 + $0x70] sm:$0xff] %v170
  %203 = vst [vmem:[%s3 + $0x78] sm:$0xff] %v171
  %204 = vst [vmem:[%s3 + $0x80] sm:$0xff] %v172
  %205 = vst [vmem:[%s3 + $0x88] sm:$0xff] %v173
  %206 = vst [vmem:[%s3 + $0x90] sm:$0xff] %v174
  %207 = vst [vmem:[%s3 + $0x98] sm:$0xff] %v175
  %208 = vst [vmem:[%s3 + $0xa0] sm:$0xff] %v176
  %209 = vst [vmem:[%s3 + $0xa8] sm:$0xff] %v177
  %210 = vst [vmem:[%s3 + $0xb0] sm:$0xff] %v178
  %211 = vst [vmem:[%s3 + $0xb8] sm:$0xff] %v179
  %212 = vst [vmem:[%s3 + $0xc0] sm:$0xff] %v180
  %213 = vst [vmem:[%s3 + $0xc8] sm:$0xff] %v181
  %214 = vst [vmem:[%s3 + $0xd0] sm:$0xff] %v182
  %215 = vst [vmem:[%s3 + $0xd8] sm:$0xff] %v183
  %216 = vst [vmem:[%s3 + $0xe0] sm:$0xff] %v184
  %217 = vst [vmem:[%s3 + $0xe8] sm:$0xff] %v185
  %218 = vst [vmem:[%s3 + $0xf0] sm:$0xff] %v186
  %219 = vst [vmem:[%s3 + $0xf8] sm:$0xff] %v187
  // Predicated region
  $region14: #{sep_conv3d.5} parent=0 // pred_check
    _
  $region15: #{sep_conv3d.5} parent=0 // pred_check_branch
    %221 = sbr.rel (0) target = $region17
  $region16: #{sep_conv3d.5} parent=0 // pred_region
    _
  $region17: #{sep_conv3d.5} parent=0 // pred_fallthru
    _
  // Predicated region
  $region18: #{sep_conv3d.5} parent=0 // pred_check
    _
  $region19: #{sep_conv3d.5} parent=0 // pred_check_branch
    %223 = sbr.rel (0) target = $region21
  $region20: #{sep_conv3d.5} parent=0 // pred_region
    _
  $region21: #{sep_conv3d.5} parent=0 // pred_fallthru
    _

</llo_original>
